<compile_context>
chip_gen: v7x
topology: tpu7x:2x2x1
jax: 0.10.0
libtpu: 0.0.40
codegen_flags: <defaults>
</compile_context>

<pallas_src>
import functools

import jax
import jax.numpy as jnp
from jax.experimental import pallas as pl
from jax.experimental.pallas import tpu as pltpu


_SEQ_TILE = 256     # target sequence tile for projection/attention/final kernels


def _pick_tile(n, target):
    """Largest tile t <= target with t % 8 == 0 (sublane) and n % t == 0; else full n."""
    if n <= target:
        return n
    t = (target // 8) * 8
    while t >= 8:
        if n % t == 0:
            return t
        t -= 8
    return n


# ----------------------------- Pallas kernels -------------------------------

def _qkv_proj_kernel(scale, q_ref, k_ref, v_ref, w_ref, b_ref, qo_ref, ko_ref, vo_ref):
    # q/k/v_ref: (1, tl, D) f32; w_ref: (3, D, D) bf16; b_ref: (3, 1, D) f32
    # qo/ko/vo_ref: (1, tl, D) bf16
    wt = w_ref.dtype
    qp = jnp.dot(q_ref[0].astype(wt), w_ref[0], preferred_element_type=jnp.float32) + b_ref[0]
    kp = jnp.dot(k_ref[0].astype(wt), w_ref[1], preferred_element_type=jnp.float32) + b_ref[1]
    vp = jnp.dot(v_ref[0].astype(wt), w_ref[2], preferred_element_type=jnp.float32) + b_ref[2]
    qo_ref[0] = (qp * scale).astype(qo_ref.dtype)    # softmax scale folded into Q
    ko_ref[0] = kp.astype(ko_ref.dtype)
    vo_ref[0] = vp.astype(vo_ref.dtype)


def _qkv_proj_self_kernel(scale, model_dim, x_ref, w_ref, b_ref, qo_ref, ko_ref, vo_ref):
    # Self-attention fast path: one (tl, D) @ (D, 3D) matmul keeps the MXU fuller.
    # x_ref: (1, tl, D) f32; w_ref: (D, 3D) bf16; b_ref: (1, 3D) f32
    y = jnp.dot(x_ref[0].astype(w_ref.dtype), w_ref[...],
                preferred_element_type=jnp.float32) + b_ref[...]
    d = model_dim
    qo_ref[0] = (y[:, :d] * scale).astype(qo_ref.dtype)
    ko_ref[0] = y[:, d:2 * d].astype(ko_ref.dtype)
    vo_ref[0] = y[:, 2 * d:].astype(vo_ref.dtype)


def _attention_kernel(q_ref, k_ref, v_ref, ctx_ref, *maybe_attn_ref):
    # q_ref: (1, tq, d) bf16 (pre-scaled); k/v_ref: (1, L, d) bf16
    # ctx_ref: (1, tq, d) bf16; optional attn ref: (1, tq, L)
    q = q_ref[0]
    k = k_ref[0]
    v = v_ref[0]
    # Q K^T without materializing a transposed copy of K (contract last dims).
    s = jax.lax.dot_general(q, k, (((1,), (1,)), ((), ())),
                            preferred_element_type=jnp.float32)          # (tq, L) f32
    m = jnp.max(s, axis=-1, keepdims=True)
    p = jnp.exp(s - m)                                                    # f32 exp (EUP)
    denom = jnp.sum(p, axis=-1, keepdims=True)
    inv = pl.reciprocal(denom)            # exact (approx=False) for numerical parity
    # Deferred normalization: scale the (tq, d) context instead of the (tq, L) probs.
    ctx = jnp.dot(p.astype(v.dtype), v, preferred_element_type=jnp.float32)
    ctx_ref[0] = (ctx * inv).astype(ctx_ref.dtype)
    if maybe_attn_ref:                    # static Python check: attn output is optional
        maybe_attn_ref[0][0] = (p * inv).astype(maybe_attn_ref[0].dtype)


def _final_kernel(ctx_ref, w_ref, b_ref, res_ref, g_ref, beta_ref, o_ref):
    # ctx_ref: (1, tl, D) bf16; w_ref: (D, D) bf16; b/g/beta_ref: (1, D) f32
    # res_ref/o_ref: (1, tl, D) f32
    proj = jnp.dot(ctx_ref[0], w_ref[...], preferred_element_type=jnp.float32) + b_ref[...]
    x = res_ref[0] + proj
    mean = jnp.mean(x, axis=-1, keepdims=True)
    xc = x - mean                                     # reuse centered intermediate
    var = jnp.mean(xc * xc, axis=-1, keepdims=True)
    o_ref[0] = (xc * jax.lax.rsqrt(var + 1e-5)) * g_ref[...] + beta_ref[...]


# ------------------------------ wrappers -------------------------------------

def pallas_qkv_proj(q, k, v, wqkv, bqkv, scale, *, out_dtype=jnp.bfloat16):
    B, L, D = q.shape
    tl = _pick_tile(L, _SEQ_TILE)
    act_spec = pl.BlockSpec((1, tl, D), lambda b, l: (b, l, 0))
    out = jax.ShapeDtypeStruct((B, L, D), out_dtype)
    # TODO(synk): single-buffer the constant weight/bias blocks
    # (pipeline_mode=pl.Buffered(1)) once verified on the target jax build.
    return pl.pallas_call(
        functools.partial(_qkv_proj_kernel, scale),
        out_shape=(out, out, out),
        grid=(B, L // tl),
        in_specs=[
            act_spec, act_spec, act_spec,
            pl.BlockSpec((3, D, D), lambda b, l: (0, 0, 0)),
            pl.BlockSpec((3, 1, D), lambda b, l: (0, 0, 0)),
        ],
        out_specs=(act_spec, act_spec, act_spec),
        compiler_params=pltpu.CompilerParams(
            dimension_semantics=("parallel", "parallel")),
    )(q, k, v, wqkv, bqkv)


def pallas_qkv_proj_self(x, wcat, bcat, scale, model_dim, *, out_dtype=jnp.bfloat16):
    B, L, D = x.shape
    tl = _pick_tile(L, _SEQ_TILE)
    act_spec = pl.BlockSpec((1, tl, D), lambda b, l: (b, l, 0))
    out = jax.ShapeDtypeStruct((B, L, D), out_dtype)
    return pl.pallas_call(
        functools.partial(_qkv_proj_self_kernel, scale, model_dim),
        out_shape=(out, out, out),
        grid=(B, L // tl),
        in_specs=[
            act_spec,
            pl.BlockSpec((D, 3 * D), lambda b, l: (0, 0)),
            pl.BlockSpec((1, 3 * D), lambda b, l: (0, 0)),
        ],
        out_specs=(act_spec, act_spec, act_spec),
        compiler_params=pltpu.CompilerParams(
            dimension_semantics=("parallel", "parallel")),
    )(x, wcat, bcat)


def pallas_attention(qh, kh, vh, *, return_attention=True,
                     attention_dtype=jnp.float32, ctx_dtype=jnp.bfloat16):
    BH, L, d = qh.shape
    tq = _pick_tile(L, _SEQ_TILE)
    q_spec = pl.BlockSpec((1, tq, d), lambda bh, qi: (bh, qi, 0))
    # K/V block index is constant along the inner q-tile axis -> DMA'd once per head.
    kv_spec = pl.BlockSpec((1, L, d), lambda bh, qi: (bh, 0, 0))
    out_shape = [jax.ShapeDtypeStruct((BH, L, d), ctx_dtype)]
    out_specs = [q_spec]
    if return_attention:
        out_shape.append(jax.ShapeDtypeStruct((BH, L, L), attention_dtype))
        out_specs.append(pl.BlockSpec((1, tq, L), lambda bh, qi: (bh, qi, 0)))
    res = pl.pallas_call(
        _attention_kernel,
        out_shape=tuple(out_shape),
        grid=(BH, L // tq),
        in_specs=[q_spec, kv_spec, kv_spec],
        out_specs=tuple(out_specs),
        compiler_params=pltpu.CompilerParams(
            dimension_semantics=("parallel", "parallel")),
    )(qh, kh, vh)
    ctx = res[0]
    attn = res[1] if return_attention else None
    return ctx, attn


def pallas_final(ctx, w, b, residual, gamma, beta):
    B, L, D = ctx.shape
    tl = _pick_tile(L, _SEQ_TILE)
    act_spec = pl.BlockSpec((1, tl, D), lambda bi, li: (bi, li, 0))
    vec_spec = pl.BlockSpec((1, D), lambda bi, li: (0, 0))
    return pl.pallas_call(
        _final_kernel,
        out_shape=jax.ShapeDtypeStruct((B, L, D), jnp.float32),
        grid=(B, L // tl),
        in_specs=[
            act_spec,                                     # context (bf16)
            pl.BlockSpec((D, D), lambda bi, li: (0, 0)),  # Wo (bf16)
            vec_spec,                                     # bo
            act_spec,                                     # residual (f32)
            vec_spec, vec_spec,                           # gamma, beta
        ],
        out_specs=act_spec,
        compiler_params=pltpu.CompilerParams(
            dimension_semantics=("parallel", "parallel")),
    )(ctx, w, b.reshape(1, D), residual, gamma.reshape(1, D), beta.reshape(1, D))


# --------------------------- MultiHeadAttention ------------------------------

def init_params(key, model_dim):
    """Deterministic parameter init mimicking nn.Linear default (uniform +-1/sqrt(in))."""
    ks = jax.random.split(key, 8)
    bound = 1.0 / (model_dim ** 0.5)

    def u(k, shape):
        return jax.random.uniform(k, shape, jnp.float32, -bound, bound)

    return {
        "wq": u(ks[0], (model_dim, model_dim)), "bq": u(ks[1], (model_dim,)),
        "wk": u(ks[2], (model_dim, model_dim)), "bk": u(ks[3], (model_dim,)),
        "wv": u(ks[4], (model_dim, model_dim)), "bv": u(ks[5], (model_dim,)),
        "wo": u(ks[6], (model_dim, model_dim)), "bo": u(ks[7], (model_dim,)),
        "ln_gamma": jnp.ones((model_dim,), jnp.float32),
        "ln_beta": jnp.zeros((model_dim,), jnp.float32),
    }


def multi_head_attention(params, q, k, v, num_heads, *, self_attention=False,
                         return_attention=True, attention_dtype=jnp.float32):
    """Forward pass of the reference MultiHeadAttention (attn_mask=None path)."""
    # TODO(synk): attn_mask is not supported (the reference path uses attn_mask=None).
    B, L, D = q.shape
    dim_per_head = D // num_heads
    scale = float(dim_per_head) ** (-0.5)
    residual = q

    if self_attention:
        # q is k is v: fuse the three projections into one (tl, D) @ (D, 3D) matmul.
        wcat = jnp.concatenate([params["wq"], params["wk"], params["wv"]], axis=1)
        bcat = jnp.concatenate([params["bq"], params["bk"], params["bv"]])[None, :]
        q_p, k_p, v_p = pallas_qkv_proj_self(q, wcat.astype(jnp.bfloat16), bcat, scale, D)
    else:
        wqkv = jnp.stack([params["wq"], params["wk"], params["wv"]]).astype(jnp.bfloat16)
        bqkv = jnp.stack([params["bq"], params["bk"], params["bv"]])[:, None, :]
        q_p, k_p, v_p = pallas_qkv_proj(q, k, v, wqkv, bqkv, scale)

    # exact equivalent of torch .view(batch*heads, -1, dim_per_head):
    # a free row-major reinterpretation of the contiguous (B, L, D) buffers.
    qh = jnp.reshape(q_p, (B * num_heads, -1, dim_per_head))
    kh = jnp.reshape(k_p, (B * num_heads, -1, dim_per_head))
    vh = jnp.reshape(v_p, (B * num_heads, -1, dim_per_head))

    context, attention = pallas_attention(
        qh, kh, vh, return_attention=return_attention, attention_dtype=attention_dtype)

    # torch .view(batch, -1, dim_per_head * num_heads)
    context = jnp.reshape(context, (B, -1, dim_per_head * num_heads))

    output = pallas_final(context, params["wo"].astype(jnp.bfloat16), params["bo"],
                          residual, params["ln_gamma"], params["ln_beta"])
    # dropout(p=0.0) is the identity
    return output, attention


# ----------------------------- pure-JAX reference -----------------------------

def _reference(params, q, k, v, num_heads):
    B, L, D = q.shape
    d = D // num_heads
    residual = q
    qp = q @ params["wq"] + params["bq"]
    kp = k @ params["wk"] + params["bk"]
    vp = v @ params["wv"] + params["bv"]
    qh = qp.reshape(B * num_heads, -1, d)
    kh = kp.reshape(B * num_heads, -1, d)
    vh = vp.reshape(B * num_heads, -1, d)
    s = jnp.einsum("bld,bmd->blm", qh, kh) * (d ** -0.5)
    attn = jax.nn.softmax(s, axis=-1)
    ctx = jnp.einsum("blm,bmd->bld", attn, vh).reshape(B, -1, D)
    x = residual + (ctx @ params["wo"] + params["bo"])
    mean = x.mean(-1, keepdims=True)
    var = ((x - mean) ** 2).mean(-1, keepdims=True)
    out = (x - mean) * jax.lax.rsqrt(var + 1e-5) * params["ln_gamma"] + params["ln_beta"]
    return out, attn


# ---------------------------------- main --------------------------------------

if __name__ == "__main__":
    B, L, D, H = 2, 8, 32, 4  # batch, seq, model_dim, num_heads  (dim_per_head = 8)

    key = jax.random.PRNGKey(0)
    kq, kk, kv, kp = jax.random.split(key, 4)
    q = jax.random.normal(kq, (B, L, D), jnp.float32)
    k = jax.random.normal(kk, (B, L, D), jnp.float32)
    v = jax.random.normal(kv, (B, L, D), jnp.float32)
    params = init_params(kp, D)

    mha = jax.jit(multi_head_attention,
                  static_argnames=("num_heads", "self_attention", "return_attention"))

    # cross-attention (distinct q, k, v) — general QKV projection path
    out, attn = mha(params, q, k, v, num_heads=H)
    jax.block_until_ready((out, attn))
    assert out.shape == (B, L, D) and out.dtype == jnp.float32
    assert attn.shape == (B * H, L, L)

    out_ref, attn_ref = _reference(params, q, k, v, H)
    assert jnp.allclose(attn, attn_ref, atol=5e-2), "attention mismatch vs reference"
    assert jnp.allclose(out, out_ref, atol=1e-1, rtol=5e-2), "output mismatch vs reference"

    # self-attention path exercising the fused (D, 3D) QKV projection
    out_sa, attn_sa = mha(params, q, q, q, num_heads=H, self_attention=True)
    jax.block_until_ready((out_sa, attn_sa))
    out_sa_ref, attn_sa_ref = _reference(params, q, q, q, H)
    assert out_sa.shape == (B, L, D) and attn_sa.shape == (B * H, L, L)
    assert jnp.allclose(attn_sa, attn_sa_ref, atol=5e-2), "self-attn attention mismatch"
    assert jnp.allclose(out_sa, out_sa_ref, atol=1e-1, rtol=5e-2), "self-attn output mismatch"

    print("KERNEL_OK")
</pallas_src>

<mosaic_0001>
module attributes {stable_mosaic.version = 11 : i64} {
  func.func @_qkv_proj_kernel(%arg0: i32, %arg1: i32, %arg2: memref<1x8x32xf32, #tpu.memory_space<vmem>>, %arg3: memref<1x8x32xf32, #tpu.memory_space<vmem>>, %arg4: memref<1x8x32xf32, #tpu.memory_space<vmem>>, %arg5: memref<3x32x32xbf16, #tpu.memory_space<vmem>>, %arg6: memref<3x1x32xf32, #tpu.memory_space<vmem>>, %arg7: memref<1x8x32xbf16, #tpu.memory_space<vmem>>, %arg8: memref<1x8x32xbf16, #tpu.memory_space<vmem>>, %arg9: memref<1x8x32xbf16, #tpu.memory_space<vmem>>) attributes {dimension_semantics = [#tpu.dimension_semantics<parallel>, #tpu.dimension_semantics<parallel>], iteration_bounds = array<i64: 2, 1>, scalar_prefetch = 0 : i64, scratch_operands = 0 : i64, tpu.core_type = #tpu.core_type<tc>, window_params = [{transform_indices = @transform_0, window_bounds = array<i64: 1, 8, 32>}, {transform_indices = @transform_1, window_bounds = array<i64: 1, 8, 32>}, {transform_indices = @transform_2, window_bounds = array<i64: 1, 8, 32>}, {pipeline_mode = #tpu.pipeline_mode<synchronous>, transform_indices = @transform_3, window_bounds = array<i64: 3, 32, 32>}, {pipeline_mode = #tpu.pipeline_mode<synchronous>, transform_indices = @transform_4, window_bounds = array<i64: 3, 1, 32>}, {transform_indices = @transform_5, window_bounds = array<i64: 1, 8, 32>}, {transform_indices = @transform_6, window_bounds = array<i64: 1, 8, 32>}, {transform_indices = @transform_7, window_bounds = array<i64: 1, 8, 32>}]} {
    %c0 = arith.constant 0 : index
    %c0_0 = arith.constant 0 : index
    %c0_1 = arith.constant 0 : index
    %0 = vector.load %arg2[%c0, %c0_0, %c0_1] : memref<1x8x32xf32, #tpu.memory_space<vmem>>, vector<1x8x32xf32>
    %1 = vector.shape_cast %0 : vector<1x8x32xf32> to vector<8x32xf32>
    %2 = arith.truncf %1 : vector<8x32xf32> to vector<8x32xbf16>
    %c0_2 = arith.constant 0 : index
    %c0_3 = arith.constant 0 : index
    %c0_4 = arith.constant 0 : index
    %3 = vector.load %arg5[%c0_2, %c0_3, %c0_4] : memref<3x32x32xbf16, #tpu.memory_space<vmem>>, vector<1x32x32xbf16>
    %4 = vector.shape_cast %3 : vector<1x32x32xbf16> to vector<32x32xbf16>
    %cst = arith.constant dense<0.000000e+00> : vector<8x32xf32>
    %5 = tpu.matmul %2, %4, %cst {dimension_numbers = #tpu.dot_dimension_numbers<[1], [0], [0], [1], [0, 0, 1, 1], [], []>} : vector<8x32xbf16>, vector<32x32xbf16>, vector<8x32xf32> -> vector<8x32xf32>
    %c0_5 = arith.constant 0 : index
    %c0_6 = arith.constant 0 : index
    %c0_7 = arith.constant 0 : index
    %6 = vector.load %arg6[%c0_5, %c0_6, %c0_7] : memref<3x1x32xf32, #tpu.memory_space<vmem>>, vector<1x1x32xf32>
    %7 = vector.shape_cast %6 : vector<1x1x32xf32> to vector<1x32xf32>
    %8 = vector.broadcast %7 : vector<1x32xf32> to vector<8x32xf32>
    %9 = arith.addf %5, %8 : vector<8x32xf32>
    %c0_8 = arith.constant 0 : index
    %c0_9 = arith.constant 0 : index
    %c0_10 = arith.constant 0 : index
    %10 = vector.load %arg3[%c0_8, %c0_9, %c0_10] : memref<1x8x32xf32, #tpu.memory_space<vmem>>, vector<1x8x32xf32>
    %11 = vector.shape_cast %10 : vector<1x8x32xf32> to vector<8x32xf32>
    %12 = arith.truncf %11 : vector<8x32xf32> to vector<8x32xbf16>
    %c1 = arith.constant 1 : index
    %c0_11 = arith.constant 0 : index
    %c0_12 = arith.constant 0 : index
    %13 = vector.load %arg5[%c1, %c0_11, %c0_12] : memref<3x32x32xbf16, #tpu.memory_space<vmem>>, vector<1x32x32xbf16>
    %14 = vector.shape_cast %13 : vector<1x32x32xbf16> to vector<32x32xbf16>
    %cst_13 = arith.constant dense<0.000000e+00> : vector<8x32xf32>
    %15 = tpu.matmul %12, %14, %cst_13 {dimension_numbers = #tpu.dot_dimension_numbers<[1], [0], [0], [1], [0, 0, 1, 1], [], []>} : vector<8x32xbf16>, vector<32x32xbf16>, vector<8x32xf32> -> vector<8x32xf32>
    %c1_14 = arith.constant 1 : index
    %c0_15 = arith.constant 0 : index
    %c0_16 = arith.constant 0 : index
    %16 = vector.load %arg6[%c1_14, %c0_15, %c0_16] : memref<3x1x32xf32, #tpu.memory_space<vmem>>, vector<1x1x32xf32>
    %17 = vector.shape_cast %16 : vector<1x1x32xf32> to vector<1x32xf32>
    %18 = vector.broadcast %17 : vector<1x32xf32> to vector<8x32xf32>
    %19 = arith.addf %15, %18 : vector<8x32xf32>
    %c0_17 = arith.constant 0 : index
    %c0_18 = arith.constant 0 : index
    %c0_19 = arith.constant 0 : index
    %20 = vector.load %arg4[%c0_17, %c0_18, %c0_19] : memref<1x8x32xf32, #tpu.memory_space<vmem>>, vector<1x8x32xf32>
    %21 = vector.shape_cast %20 : vector<1x8x32xf32> to vector<8x32xf32>
    %22 = arith.truncf %21 : vector<8x32xf32> to vector<8x32xbf16>
    %c2 = arith.constant 2 : index
    %c0_20 = arith.constant 0 : index
    %c0_21 = arith.constant 0 : index
    %23 = vector.load %arg5[%c2, %c0_20, %c0_21] : memref<3x32x32xbf16, #tpu.memory_space<vmem>>, vector<1x32x32xbf16>
    %24 = vector.shape_cast %23 : vector<1x32x32xbf16> to vector<32x32xbf16>
    %cst_22 = arith.constant dense<0.000000e+00> : vector<8x32xf32>
    %25 = tpu.matmul %22, %24, %cst_22 {dimension_numbers = #tpu.dot_dimension_numbers<[1], [0], [0], [1], [0, 0, 1, 1], [], []>} : vector<8x32xbf16>, vector<32x32xbf16>, vector<8x32xf32> -> vector<8x32xf32>
    %c2_23 = arith.constant 2 : index
    %c0_24 = arith.constant 0 : index
    %c0_25 = arith.constant 0 : index
    %26 = vector.load %arg6[%c2_23, %c0_24, %c0_25] : memref<3x1x32xf32, #tpu.memory_space<vmem>>, vector<1x1x32xf32>
    %27 = vector.shape_cast %26 : vector<1x1x32xf32> to vector<1x32xf32>
    %28 = vector.broadcast %27 : vector<1x32xf32> to vector<8x32xf32>
    %29 = arith.addf %25, %28 : vector<8x32xf32>
    %cst_26 = arith.constant 0.353553385 : f32
    %30 = vector.broadcast %cst_26 : f32 to vector<8x32xf32>
    %31 = arith.mulf %9, %30 : vector<8x32xf32>
    %32 = arith.truncf %31 : vector<8x32xf32> to vector<8x32xbf16>
    %c0_27 = arith.constant 0 : index
    %c0_28 = arith.constant 0 : index
    %c0_29 = arith.constant 0 : index
    %33 = vector.load %arg7[%c0_27, %c0_28, %c0_29] : memref<1x8x32xbf16, #tpu.memory_space<vmem>>, vector<1x8x32xbf16>
    %34 = vector.shape_cast %33 : vector<1x8x32xbf16> to vector<8x32xbf16>
    %35 = vector.shape_cast %32 : vector<8x32xbf16> to vector<1x8x32xbf16>
    tpu.vector_store %arg7[%c0_27, %c0_28, %c0_29], %35 {strides = array<i32>} : memref<1x8x32xbf16, #tpu.memory_space<vmem>>, vector<1x8x32xbf16>,
    %36 = arith.truncf %19 : vector<8x32xf32> to vector<8x32xbf16>
    %c0_30 = arith.constant 0 : index
    %c0_31 = arith.constant 0 : index
    %c0_32 = arith.constant 0 : index
    %37 = vector.load %arg8[%c0_30, %c0_31, %c0_32] : memref<1x8x32xbf16, #tpu.memory_space<vmem>>, vector<1x8x32xbf16>
    %38 = vector.shape_cast %37 : vector<1x8x32xbf16> to vector<8x32xbf16>
    %39 = vector.shape_cast %36 : vector<8x32xbf16> to vector<1x8x32xbf16>
    tpu.vector_store %arg8[%c0_30, %c0_31, %c0_32], %39 {strides = array<i32>} : memref<1x8x32xbf16, #tpu.memory_space<vmem>>, vector<1x8x32xbf16>,
    %40 = arith.truncf %29 : vector<8x32xf32> to vector<8x32xbf16>
    %c0_33 = arith.constant 0 : index
    %c0_34 = arith.constant 0 : index
    %c0_35 = arith.constant 0 : index
    %41 = vector.load %arg9[%c0_33, %c0_34, %c0_35] : memref<1x8x32xbf16, #tpu.memory_space<vmem>>, vector<1x8x32xbf16>
    %42 = vector.shape_cast %41 : vector<1x8x32xbf16> to vector<8x32xbf16>
    %43 = vector.shape_cast %40 : vector<8x32xbf16> to vector<1x8x32xbf16>
    tpu.vector_store %arg9[%c0_33, %c0_34, %c0_35], %43 {strides = array<i32>} : memref<1x8x32xbf16, #tpu.memory_space<vmem>>, vector<1x8x32xbf16>,
    return
  }
  func.func @transform_0(%arg0: i32, %arg1: i32) -> (i32, i32, i32) {
    %c0_i32 = arith.constant 0 : i32
    %c0_i32_0 = arith.constant 0 : i32
    return %arg0, %arg1, %c0_i32 : i32, i32, i32
  }
  func.func @transform_1(%arg0: i32, %arg1: i32) -> (i32, i32, i32) {
    %c0_i32 = arith.constant 0 : i32
    %c0_i32_0 = arith.constant 0 : i32
    return %arg0, %arg1, %c0_i32 : i32, i32, i32
  }
  func.func @transform_2(%arg0: i32, %arg1: i32) -> (i32, i32, i32) {
    %c0_i32 = arith.constant 0 : i32
    %c0_i32_0 = arith.constant 0 : i32
    return %arg0, %arg1, %c0_i32 : i32, i32, i32
  }
  func.func @transform_3(%arg0: i32, %arg1: i32) -> (i32, i32, i32) {
    %c0_i32 = arith.constant 0 : i32
    %c0_i32_0 = arith.constant 0 : i32
    %c0_i32_1 = arith.constant 0 : i32
    %c0_i32_2 = arith.constant 0 : i32
    return %c0_i32, %c0_i32_0, %c0_i32_1 : i32, i32, i32
  }
  func.func @transform_4(%arg0: i32, %arg1: i32) -> (i32, i32, i32) {
    %c0_i32 = arith.constant 0 : i32
    %c0_i32_0 = arith.constant 0 : i32
    %c0_i32_1 = arith.constant 0 : i32
    %c0_i32_2 = arith.constant 0 : i32
    return %c0_i32, %c0_i32_0, %c0_i32_1 : i32, i32, i32
  }
  func.func @transform_5(%arg0: i32, %arg1: i32) -> (i32, i32, i32) {
    %c0_i32 = arith.constant 0 : i32
    %c0_i32_0 = arith.constant 0 : i32
    return %arg0, %arg1, %c0_i32 : i32, i32, i32
  }
  func.func @transform_6(%arg0: i32, %arg1: i32) -> (i32, i32, i32) {
    %c0_i32 = arith.constant 0 : i32
    %c0_i32_0 = arith.constant 0 : i32
    return %arg0, %arg1, %c0_i32 : i32, i32, i32
  }
  func.func @transform_7(%arg0: i32, %arg1: i32) -> (i32, i32, i32) {
    %c0_i32 = arith.constant 0 : i32
    %c0_i32_0 = arith.constant 0 : i32
    return %arg0, %arg1, %c0_i32 : i32, i32, i32
  }
}

module attributes {stable_mosaic.version = 11 : i64} {
  func.func @_attention_kernel(%arg0: i32, %arg1: i32, %arg2: memref<1x8x8xbf16, #tpu.memory_space<vmem>>, %arg3: memref<1x8x8xbf16, #tpu.memory_space<vmem>>, %arg4: memref<1x8x8xbf16, #tpu.memory_space<vmem>>, %arg5: memref<1x8x8xbf16, #tpu.memory_space<vmem>>, %arg6: memref<1x8x8xf32, #tpu.memory_space<vmem>>) attributes {dimension_semantics = [#tpu.dimension_semantics<parallel>, #tpu.dimension_semantics<parallel>], iteration_bounds = array<i64: 8, 1>, scalar_prefetch = 0 : i64, scratch_operands = 0 : i64, tpu.core_type = #tpu.core_type<tc>, window_params = [{transform_indices = @transform_0, window_bounds = array<i64: 1, 8, 8>}, {transform_indices = @transform_1, window_bounds = array<i64: 1, 8, 8>}, {transform_indices = @transform_2, window_bounds = array<i64: 1, 8, 8>}, {transform_indices = @transform_3, window_bounds = array<i64: 1, 8, 8>}, {transform_indices = @transform_4, window_bounds = array<i64: 1, 8, 8>}]} {
    %c0 = arith.constant 0 : index
    %c0_0 = arith.constant 0 : index
    %c0_1 = arith.constant 0 : index
    %0 = vector.load %arg2[%c0, %c0_0, %c0_1] : memref<1x8x8xbf16, #tpu.memory_space<vmem>>, vector<1x8x8xbf16>
    %1 = vector.shape_cast %0 : vector<1x8x8xbf16> to vector<8x8xbf16>
    %c0_2 = arith.constant 0 : index
    %c0_3 = arith.constant 0 : index
    %c0_4 = arith.constant 0 : index
    %2 = vector.load %arg3[%c0_2, %c0_3, %c0_4] : memref<1x8x8xbf16, #tpu.memory_space<vmem>>, vector<1x8x8xbf16>
    %3 = vector.shape_cast %2 : vector<1x8x8xbf16> to vector<8x8xbf16>
    %c0_5 = arith.constant 0 : index
    %c0_6 = arith.constant 0 : index
    %c0_7 = arith.constant 0 : index
    %4 = vector.load %arg4[%c0_5, %c0_6, %c0_7] : memref<1x8x8xbf16, #tpu.memory_space<vmem>>, vector<1x8x8xbf16>
    %5 = vector.shape_cast %4 : vector<1x8x8xbf16> to vector<8x8xbf16>
    %cst = arith.constant dense<0.000000e+00> : vector<8x8xf32>
    %6 = tpu.matmul %1, %3, %cst {dimension_numbers = #tpu.dot_dimension_numbers<[1], [1], [0], [0], [0, 0, 1, 0], [], []>} : vector<8x8xbf16>, vector<8x8xbf16>, vector<8x8xf32> -> vector<8x8xf32>
    %cst_8 = arith.constant dense<0xFF800000> : vector<8xf32>
    %7 = vector.multi_reduction <maximumf>, %6, %cst_8 [1] : vector<8x8xf32> to vector<8xf32>
    %8 = vector.shape_cast %7 : vector<8xf32> to vector<8x1xf32>
    %9 = vector.broadcast %8 : vector<8x1xf32> to vector<8x8xf32>
    %10 = arith.subf %6, %9 : vector<8x8xf32>
    %11 = math.exp %10 : vector<8x8xf32>
    %cst_9 = arith.constant dense<0.000000e+00> : vector<8xf32>
    %12 = vector.multi_reduction <add>, %11, %cst_9 [1] : vector<8x8xf32> to vector<8xf32>
    %13 = vector.shape_cast %12 : vector<8xf32> to vector<8x1xf32>
    %14 = tpu.reciprocal %13 : vector<8x1xf32> -> vector<8x1xf32>
    %15 = arith.truncf %11 : vector<8x8xf32> to vector<8x8xbf16>
    %cst_10 = arith.constant dense<0.000000e+00> : vector<8x8xf32>
    %16 = tpu.matmul %15, %5, %cst_10 {dimension_numbers = #tpu.dot_dimension_numbers<[1], [0], [0], [1], [0, 0, 1, 1], [], []>} : vector<8x8xbf16>, vector<8x8xbf16>, vector<8x8xf32> -> vector<8x8xf32>
    %17 = vector.broadcast %14 : vector<8x1xf32> to vector<8x8xf32>
    %18 = arith.mulf %16, %17 : vector<8x8xf32>
    %19 = arith.truncf %18 : vector<8x8xf32> to vector<8x8xbf16>
    %c0_11 = arith.constant 0 : index
    %c0_12 = arith.constant 0 : index
    %c0_13 = arith.constant 0 : index
    %20 = vector.load %arg5[%c0_11, %c0_12, %c0_13] : memref<1x8x8xbf16, #tpu.memory_space<vmem>>, vector<1x8x8xbf16>
    %21 = vector.shape_cast %20 : vector<1x8x8xbf16> to vector<8x8xbf16>
    %22 = vector.shape_cast %19 : vector<8x8xbf16> to vector<1x8x8xbf16>
    tpu.vector_store %arg5[%c0_11, %c0_12, %c0_13], %22 {strides = array<i32>} : memref<1x8x8xbf16, #tpu.memory_space<vmem>>, vector<1x8x8xbf16>,
    %23 = vector.broadcast %14 : vector<8x1xf32> to vector<8x8xf32>
    %24 = arith.mulf %11, %23 : vector<8x8xf32>
    %c0_14 = arith.constant 0 : index
    %c0_15 = arith.constant 0 : index
    %c0_16 = arith.constant 0 : index
    %25 = vector.load %arg6[%c0_14, %c0_15, %c0_16] : memref<1x8x8xf32, #tpu.memory_space<vmem>>, vector<1x8x8xf32>
    %26 = vector.shape_cast %25 : vector<1x8x8xf32> to vector<8x8xf32>
    %27 = vector.shape_cast %24 : vector<8x8xf32> to vector<1x8x8xf32>
    tpu.vector_store %arg6[%c0_14, %c0_15, %c0_16], %27 {strides = array<i32>} : memref<1x8x8xf32, #tpu.memory_space<vmem>>, vector<1x8x8xf32>,
    return
  }
  func.func @transform_0(%arg0: i32, %arg1: i32) -> (i32, i32, i32) {
    %c0_i32 = arith.constant 0 : i32
    %c0_i32_0 = arith.constant 0 : i32
    return %arg0, %arg1, %c0_i32 : i32, i32, i32
  }
  func.func @transform_1(%arg0: i32, %arg1: i32) -> (i32, i32, i32) {
    %c0_i32 = arith.constant 0 : i32
    %c0_i32_0 = arith.constant 0 : i32
    %c0_i32_1 = arith.constant 0 : i32
    return %arg0, %c0_i32, %c0_i32_0 : i32, i32, i32
  }
  func.func @transform_2(%arg0: i32, %arg1: i32) -> (i32, i32, i32) {
    %c0_i32 = arith.constant 0 : i32
    %c0_i32_0 = arith.constant 0 : i32
    %c0_i32_1 = arith.constant 0 : i32
    return %arg0, %c0_i32, %c0_i32_0 : i32, i32, i32
  }
  func.func @transform_3(%arg0: i32, %arg1: i32) -> (i32, i32, i32) {
    %c0_i32 = arith.constant 0 : i32
    %c0_i32_0 = arith.constant 0 : i32
    return %arg0, %arg1, %c0_i32 : i32, i32, i32
  }
  func.func @transform_4(%arg0: i32, %arg1: i32) -> (i32, i32, i32) {
    %c0_i32 = arith.constant 0 : i32
    %c0_i32_0 = arith.constant 0 : i32
    return %arg0, %arg1, %c0_i32 : i32, i32, i32
  }
}

module attributes {stable_mosaic.version = 11 : i64} {
  func.func @_final_kernel(%arg0: i32, %arg1: i32, %arg2: memref<1x8x32xbf16, #tpu.memory_space<vmem>>, %arg3: memref<32x32xbf16, #tpu.memory_space<vmem>>, %arg4: memref<1x32xf32, #tpu.memory_space<vmem>>, %arg5: memref<1x8x32xf32, #tpu.memory_space<vmem>>, %arg6: memref<1x32xf32, #tpu.memory_space<vmem>>, %arg7: memref<1x32xf32, #tpu.memory_space<vmem>>, %arg8: memref<1x8x32xf32, #tpu.memory_space<vmem>>) attributes {dimension_semantics = [#tpu.dimension_semantics<parallel>, #tpu.dimension_semantics<parallel>], iteration_bounds = array<i64: 2, 1>, scalar_prefetch = 0 : i64, scratch_operands = 0 : i64, tpu.core_type = #tpu.core_type<tc>, window_params = [{transform_indices = @transform_0, window_bounds = array<i64: 1, 8, 32>}, {pipeline_mode = #tpu.pipeline_mode<synchronous>, transform_indices = @transform_1, window_bounds = array<i64: 32, 32>}, {pipeline_mode = #tpu.pipeline_mode<synchronous>, transform_indices = @transform_2, window_bounds = array<i64: 1, 32>}, {transform_indices = @transform_3, window_bounds = array<i64: 1, 8, 32>}, {pipeline_mode = #tpu.pipeline_mode<synchronous>, transform_indices = @transform_4, window_bounds = array<i64: 1, 32>}, {pipeline_mode = #tpu.pipeline_mode<synchronous>, transform_indices = @transform_5, window_bounds = array<i64: 1, 32>}, {transform_indices = @transform_6, window_bounds = array<i64: 1, 8, 32>}]} {
    %c0 = arith.constant 0 : index
    %c0_0 = arith.constant 0 : index
    %c0_1 = arith.constant 0 : index
    %0 = vector.load %arg2[%c0, %c0_0, %c0_1] : memref<1x8x32xbf16, #tpu.memory_space<vmem>>, vector<1x8x32xbf16>
    %1 = vector.shape_cast %0 : vector<1x8x32xbf16> to vector<8x32xbf16>
    %c0_2 = arith.constant 0 : index
    %c0_3 = arith.constant 0 : index
    %2 = vector.load %arg3[%c0_2, %c0_3] : memref<32x32xbf16, #tpu.memory_space<vmem>>, vector<32x32xbf16>
    %cst = arith.constant dense<0.000000e+00> : vector<8x32xf32>
    %3 = tpu.matmul %1, %2, %cst {dimension_numbers = #tpu.dot_dimension_numbers<[1], [0], [0], [1], [0, 0, 1, 1], [], []>} : vector<8x32xbf16>, vector<32x32xbf16>, vector<8x32xf32> -> vector<8x32xf32>
    %c0_4 = arith.constant 0 : index
    %c0_5 = arith.constant 0 : index
    %4 = vector.load %arg4[%c0_4, %c0_5] : memref<1x32xf32, #tpu.memory_space<vmem>>, vector<1x32xf32>
    %5 = vector.broadcast %4 : vector<1x32xf32> to vector<8x32xf32>
    %6 = arith.addf %3, %5 : vector<8x32xf32>
    %c0_6 = arith.constant 0 : index
    %c0_7 = arith.constant 0 : index
    %c0_8 = arith.constant 0 : index
    %7 = vector.load %arg5[%c0_6, %c0_7, %c0_8] : memref<1x8x32xf32, #tpu.memory_space<vmem>>, vector<1x8x32xf32>
    %8 = vector.shape_cast %7 : vector<1x8x32xf32> to vector<8x32xf32>
    %9 = arith.addf %8, %6 : vector<8x32xf32>
    %cst_9 = arith.constant dense<0.000000e+00> : vector<8xf32>
    %10 = vector.multi_reduction <add>, %9, %cst_9 [1] : vector<8x32xf32> to vector<8xf32>
    %11 = vector.shape_cast %10 : vector<8xf32> to vector<8x1xf32>
    %cst_10 = arith.constant 3.200000e+01 : f32
    %12 = vector.broadcast %cst_10 : f32 to vector<8x1xf32>
    %13 = arith.divf %11, %12 : vector<8x1xf32>
    %14 = vector.broadcast %13 : vector<8x1xf32> to vector<8x32xf32>
    %15 = arith.subf %9, %14 : vector<8x32xf32>
    %16 = arith.mulf %15, %15 : vector<8x32xf32>
    %cst_11 = arith.constant dense<0.000000e+00> : vector<8xf32>
    %17 = vector.multi_reduction <add>, %16, %cst_11 [1] : vector<8x32xf32> to vector<8xf32>
    %18 = vector.shape_cast %17 : vector<8xf32> to vector<8x1xf32>
    %cst_12 = arith.constant 3.200000e+01 : f32
    %19 = vector.broadcast %cst_12 : f32 to vector<8x1xf32>
    %20 = arith.divf %18, %19 : vector<8x1xf32>
    %cst_13 = arith.constant 9.99999974E-6 : f32
    %21 = vector.broadcast %cst_13 : f32 to vector<8x1xf32>
    %22 = arith.addf %20, %21 : vector<8x1xf32>
    %23 = math.rsqrt %22 : vector<8x1xf32>
    %24 = vector.broadcast %23 : vector<8x1xf32> to vector<8x32xf32>
    %25 = arith.mulf %15, %24 : vector<8x32xf32>
    %c0_14 = arith.constant 0 : index
    %c0_15 = arith.constant 0 : index
    %26 = vector.load %arg6[%c0_14, %c0_15] : memref<1x32xf32, #tpu.memory_space<vmem>>, vector<1x32xf32>
    %27 = vector.broadcast %26 : vector<1x32xf32> to vector<8x32xf32>
    %28 = arith.mulf %25, %27 : vector<8x32xf32>
    %c0_16 = arith.constant 0 : index
    %c0_17 = arith.constant 0 : index
    %29 = vector.load %arg7[%c0_16, %c0_17] : memref<1x32xf32, #tpu.memory_space<vmem>>, vector<1x32xf32>
    %30 = vector.broadcast %29 : vector<1x32xf32> to vector<8x32xf32>
    %31 = arith.addf %28, %30 : vector<8x32xf32>
    %c0_18 = arith.constant 0 : index
    %c0_19 = arith.constant 0 : index
    %c0_20 = arith.constant 0 : index
    %32 = vector.load %arg8[%c0_18, %c0_19, %c0_20] : memref<1x8x32xf32, #tpu.memory_space<vmem>>, vector<1x8x32xf32>
    %33 = vector.shape_cast %32 : vector<1x8x32xf32> to vector<8x32xf32>
    %34 = vector.shape_cast %31 : vector<8x32xf32> to vector<1x8x32xf32>
    tpu.vector_store %arg8[%c0_18, %c0_19, %c0_20], %34 {strides = array<i32>} : memref<1x8x32xf32, #tpu.memory_space<vmem>>, vector<1x8x32xf32>,
    return
  }
  func.func @transform_0(%arg0: i32, %arg1: i32) -> (i32, i32, i32) {
    %c0_i32 = arith.constant 0 : i32
    %c0_i32_0 = arith.constant 0 : i32
    return %arg0, %arg1, %c0_i32 : i32, i32, i32
  }
  func.func @transform_1(%arg0: i32, %arg1: i32) -> (i32, i32) {
    %c0_i32 = arith.constant 0 : i32
    %c0_i32_0 = arith.constant 0 : i32
    %c0_i32_1 = arith.constant 0 : i32
    return %c0_i32, %c0_i32_0 : i32, i32
  }
  func.func @transform_2(%arg0: i32, %arg1: i32) -> (i32, i32) {
    %c0_i32 = arith.constant 0 : i32
    %c0_i32_0 = arith.constant 0 : i32
    %c0_i32_1 = arith.constant 0 : i32
    return %c0_i32, %c0_i32_0 : i32, i32
  }
  func.func @transform_3(%arg0: i32, %arg1: i32) -> (i32, i32, i32) {
    %c0_i32 = arith.constant 0 : i32
    %c0_i32_0 = arith.constant 0 : i32
    return %arg0, %arg1, %c0_i32 : i32, i32, i32
  }
  func.func @transform_4(%arg0: i32, %arg1: i32) -> (i32, i32) {
    %c0_i32 = arith.constant 0 : i32
    %c0_i32_0 = arith.constant 0 : i32
    %c0_i32_1 = arith.constant 0 : i32
    return %c0_i32, %c0_i32_0 : i32, i32
  }
  func.func @transform_5(%arg0: i32, %arg1: i32) -> (i32, i32) {
    %c0_i32 = arith.constant 0 : i32
    %c0_i32_0 = arith.constant 0 : i32
    %c0_i32_1 = arith.constant 0 : i32
    return %c0_i32, %c0_i32_0 : i32, i32
  }
  func.func @transform_6(%arg0: i32, %arg1: i32) -> (i32, i32, i32) {
    %c0_i32 = arith.constant 0 : i32
    %c0_i32_0 = arith.constant 0 : i32
    return %arg0, %arg1, %c0_i32 : i32, i32, i32
  }
}

</mosaic_0001>

<llo_original>
// kernel: multi_head_attention.5
$region0: #{multi_head_attention.5}
  #allocation0 [shape = 'u32[]', space=smem, size = 0x4, offset = 0x4, fixed_abs, tag = 'smem constant byte address 0x4 - core index']
  #allocation1 [shape = 'u32[144,128]{1,0:T(1,128)}', space=vmem, size = 0x12000, scoped, tag = 'internal scratch']
  %s0 = inlined_call_operand.vmem [shape: bf16[2,8,32], index: 0, kind: input, shape index: {}]
  %s1 = inlined_call_operand.vmem [shape: bf16[32,32], index: 1, kind: input, shape index: {}]
  %s2 = inlined_call_operand.vmem [shape: f32[1,32], index: 2, kind: input, shape index: {}]
  %s3 = inlined_call_operand.vmem [shape: f32[2,8,32], index: 3, kind: input, shape index: {}]
  %s4 = inlined_call_operand.vmem [shape: f32[1,32], index: 4, kind: input, shape index: {}]
  %s5 = inlined_call_operand.vmem [shape: f32[1,32], index: 5, kind: input, shape index: {}]
  %s6 = inlined_call_operand.hbm [shape: f32[2,8,32], index: 6, kind: output, shape index: {}]
  %s7 = sld [smem:[#allocation0]]
  $region57: #{multi_head_attention.5} parent=0
    _
  %s9 = ssub.s32 1, %s7
  %s10 = scalar_select 0, %s9, %s7
  $region1: #{multi_head_attention.5} parent=0
    #allocation2 [shape = 'u8[8192]{0}', space=vmem, size = 0x2000, scoped, tag = 'output window, operand 0']
    #allocation3 [shape = 's32[2]{0}', space=sflag, size = 0x8, scoped, tag = 'scoped memory for multi_head_attention.5']
    %11 = vsyncpa [#allocation3], 0
    %s12 = scalar_lea.sflag [#allocation3], 1
    %13 = vsyncpa %s12, 0
    loop: start=0, step=1, limit=4
    $region2: #{multi_head_attention.5} parent=1 // loop_pre_header
      _
    $region3: #{multi_head_attention.5} parent=1 // loop_header
      %s15 = sphi 0, %s19
      %p16 = scmp.ge.s32.totalorder %s15, 4
      %s22 = sphi 0, %s34
      %s23 = sphi 0, %s30
      %s24 = sphi 0, %s22
      %s25 = sphi 0, %s23
      %s26 = sphi 0, %s24
      %s27 = sphi 0, %s25
      %s39 = sphi 0, %s41
      %s42 = sphi 0, %s39
      %s43 = sphi 0, %s42
      %s59 = sphi 0, %s43
      %s63 = sphi 0, %s63
      %s65 = sphi 0, %s63
      %s66 = sphi 0, %s65
      %s80 = sphi 0, %s66
      %s84 = sphi 0, %s84
      %s86 = sphi 0, %s84
      %s87 = sphi 0, %s86
      %s101 = sphi 0, %s87
      %s109 = sphi 0, %s111
      %s112 = sphi 0, %s109
      %s113 = sphi 0, %s112
      %s129 = sphi 0, %s113
      %s133 = sphi 0, %s133
      %s135 = sphi 0, %s133
      %s136 = sphi 0, %s135
      %s150 = sphi 0, %s136
      %s154 = sphi 0, %s154
      %s156 = sphi 0, %s154
      %s157 = sphi 0, %s156
      %s171 = sphi 0, %s157
      %s179 = sphi 0, %s181
      %s182 = sphi 0, %s179
      %s183 = sphi 0, %s182
      %s199 = sphi 0, %s183
    $region4: #{multi_head_attention.5} parent=1 // loop_header_branch
      %18 = sbr.rel (%p16) target = $region8
    $region5: #{multi_head_attention.5} parent=1 // loop_body
      %s20 = ssub.s32 %s15, 1
      %s21 = ssub.s32 %s15, 2
      %s28 = sadd.s32 1, %s23
      %p29 = scmp.ge.s32.totalorder %s28, 1
      %s30 = scalar_select %p29, 0, %s28
      %s31 = sadd.s32 1, %s22
      %s32 = scalar_select %p29, %s31, %s22
      %p33 = scmp.ge.s32.totalorder %s32, 2
      %s34 = scalar_select %p33, 0, %s32
      %s35 = ssub.s32 %s22, %s34
      %s36 = ssub.s32 %s23, %s30
      %s37 = sor.u32 %s35, %s36
      %p38 = scmp.eq.s32.totalorder %s37, 0
      %s40 = sadd.s32 %s39, 1
      %s41 = scalar_select %p38, %s39, %s40
      %p44 = pneg %p38
      %p45 = scmp.eq.s32.totalorder %s15, 1
      %p46 = por %p44, %p45
      %p47 = scmp.ne.s32.totalorder %s39, %s42
      %p48 = scmp.eq.s32.totalorder %s15, 0
      %p49 = por %p47, %p48
      %p50 = scmp.ne.s32.totalorder %s39, %s42
      %p51 = scmp.eq.s32.totalorder %s20, 1
      %p52 = por %p50, %p51
      %p53 = scmp.ne.s32.totalorder %s42, %s43
      %p54 = scmp.eq.s32.totalorder %s20, 0
      %p55 = por %p53, %p54
      %p56 = scmp.ne.s32.totalorder %s42, %s43
      %p57 = scmp.eq.s32.totalorder %s21, 1
      %p58 = por %p56, %p57
      %p60 = scmp.ne.s32.totalorder %s43, %s59
      %p61 = scmp.eq.s32.totalorder %s21, 0
      %p62 = por %p60, %p61
      %s64 = sadd.s32 %s63, 1
      %p67 = scmp.eq.s32.totalorder %s15, 1
      %p68 = scmp.ne.s32.totalorder %s63, %s65
      %p69 = scmp.eq.s32.totalorder %s15, 0
      %p70 = por %p68, %p69
      %p71 = scmp.ne.s32.totalorder %s63, %s65
      %p72 = scmp.eq.s32.totalorder %s20, 1
      %p73 = por %p71, %p72
      %p74 = scmp.ne.s32.totalorder %s65, %s66
      %p75 = scmp.eq.s32.totalorder %s20, 0
      %p76 = por %p74, %p75
      %p77 = scmp.ne.s32.totalorder %s65, %s66
      %p78 = scmp.eq.s32.totalorder %s21, 1
      %p79 = por %p77, %p78
      %p81 = scmp.ne.s32.totalorder %s66, %s80
      %p82 = scmp.eq.s32.totalorder %s21, 0
      %p83 = por %p81, %p82
      %s85 = sadd.s32 %s84, 1
      %p88 = scmp.eq.s32.totalorder %s15, 1
      %p89 = scmp.ne.s32.totalorder %s84, %s86
      %p90 = scmp.eq.s32.totalorder %s15, 0
      %p91 = por %p89, %p90
      %p92 = scmp.ne.s32.totalorder %s84, %s86
      %p93 = scmp.eq.s32.totalorder %s20, 1
      %p94 = por %p92, %p93
      %p95 = scmp.ne.s32.totalorder %s86, %s87
      %p96 = scmp.eq.s32.totalorder %s20, 0
      %p97 = por %p95, %p96
      %p98 = scmp.ne.s32.totalorder %s86, %s87
      %p99 = scmp.eq.s32.totalorder %s21, 1
      %p100 = por %p98, %p99
      %p102 = scmp.ne.s32.totalorder %s87, %s101
      %p103 = scmp.eq.s32.totalorder %s21, 0
      %p104 = por %p102, %p103
      %s105 = ssub.s32 %s22, %s34
      %s106 = ssub.s32 %s23, %s30
      %s107 = sor.u32 %s105, %s106
      %p108 = scmp.eq.s32.totalorder %s107, 0
      %s110 = sadd.s32 %s109, 1
      %s111 = scalar_select %p108, %s109, %s110
      %p114 = pneg %p108
      %p115 = scmp.eq.s32.totalorder %s15, 1
      %p116 = por %p114, %p115
      %p117 = scmp.ne.s32.totalorder %s109, %s112
      %p118 = scmp.eq.s32.totalorder %s15, 0
      %p119 = por %p117, %p118
      %p120 = scmp.ne.s32.totalorder %s109, %s112
      %p121 = scmp.eq.s32.totalorder %s20, 1
      %p122 = por %p120, %p121
      %p123 = scmp.ne.s32.totalorder %s112, %s113
      %p124 = scmp.eq.s32.totalorder %s20, 0
      %p125 = por %p123, %p124
      %p126 = scmp.ne.s32.totalorder %s112, %s113
      %p127 = scmp.eq.s32.totalorder %s21, 1
      %p128 = por %p126, %p127
      %p130 = scmp.ne.s32.totalorder %s113, %s129
      %p131 = scmp.eq.s32.totalorder %s21, 0
      %p132 = por %p130, %p131
      %s134 = sadd.s32 %s133, 1
      %p137 = scmp.eq.s32.totalorder %s15, 1
      %p138 = scmp.ne.s32.totalorder %s133, %s135
      %p139 = scmp.eq.s32.totalorder %s15, 0
      %p140 = por %p138, %p139
      %p141 = scmp.ne.s32.totalorder %s133, %s135
      %p142 = scmp.eq.s32.totalorder %s20, 1
      %p143 = por %p141, %p142
      %p144 = scmp.ne.s32.totalorder %s135, %s136
      %p145 = scmp.eq.s32.totalorder %s20, 0
      %p146 = por %p144, %p145
      %p147 = scmp.ne.s32.totalorder %s135, %s136
      %p148 = scmp.eq.s32.totalorder %s21, 1
      %p149 = por %p147, %p148
      %p151 = scmp.ne.s32.totalorder %s136, %s150
      %p152 = scmp.eq.s32.totalorder %s21, 0
      %p153 = por %p151, %p152
      %s155 = sadd.s32 %s154, 1
      %p158 = scmp.eq.s32.totalorder %s15, 1
      %p159 = scmp.ne.s32.totalorder %s154, %s156
      %p160 = scmp.eq.s32.totalorder %s15, 0
      %p161 = por %p159, %p160
      %p162 = scmp.ne.s32.totalorder %s154, %s156
      %p163 = scmp.eq.s32.totalorder %s20, 1
      %p164 = por %p162, %p163
      %p165 = scmp.ne.s32.totalorder %s156, %s157
      %p166 = scmp.eq.s32.totalorder %s20, 0
      %p167 = por %p165, %p166
      %p168 = scmp.ne.s32.totalorder %s156, %s157
      %p169 = scmp.eq.s32.totalorder %s21, 1
      %p170 = por %p168, %p169
      %p172 = scmp.ne.s32.totalorder %s157, %s171
      %p173 = scmp.eq.s32.totalorder %s21, 0
      %p174 = por %p172, %p173
      %s175 = ssub.s32 %s22, %s34
      %s176 = ssub.s32 %s23, %s30
      %s177 = sor.u32 %s175, %s176
      %p178 = scmp.eq.s32.totalorder %s177, 0
      %s180 = sadd.s32 %s179, 1
      %s181 = scalar_select %p178, %s179, %s180
      %p184 = pneg %p178
      %p185 = scmp.eq.s32.totalorder %s15, 1
      %p186 = por %p184, %p185
      %p187 = scmp.ne.s32.totalorder %s179, %s182
      %p188 = scmp.eq.s32.totalorder %s15, 0
      %p189 = por %p187, %p188
      %p190 = scmp.ne.s32.totalorder %s179, %s182
      %p191 = scmp.eq.s32.totalorder %s20, 1
      %p192 = por %p190, %p191
      %p193 = scmp.ne.s32.totalorder %s182, %s183
      %p194 = scmp.eq.s32.totalorder %s20, 0
      %p195 = por %p193, %p194
      %p196 = scmp.ne.s32.totalorder %s182, %s183
      %p197 = scmp.eq.s32.totalorder %s21, 1
      %p198 = por %p196, %p197
      %p200 = scmp.ne.s32.totalorder %s183, %s199
      %p201 = scmp.eq.s32.totalorder %s21, 0
      %p202 = por %p200, %p201
      %p203 = scmp.le.s32.totalorder 1, %s15
      %p204 = scmp.lt.s32.totalorder %s15, 3
      %p205 = pnand %p203, %p204
      %p206 = pneg %p205
      // Predicated region
      $region9: #{multi_head_attention.5} parent=5 // pred_check
        _
      $region10: #{multi_head_attention.5} parent=5 // pred_check_branch
        %208 = sbr.rel (%p205) target = $region12
      $region11: #{multi_head_attention.5} parent=5 // pred_region
        %s209 = ssub.s32 %s15, 1
        // Predicated region
        $region13: #{multi_head_attention.5} parent=11 // pred_check
          %p210 = pneg %p76
        $region14: #{multi_head_attention.5} parent=11 // pred_check_branch
          %212 = sbr.rel (%p210) target = $region16
        $region15: #{multi_head_attention.5} parent=11 // pred_region
          _
        $region16: #{multi_head_attention.5} parent=11 // pred_fallthru
          _
        // Predicated region
        $region17: #{multi_head_attention.5} parent=11 // pred_check
          %p213 = pneg %p97
        $region18: #{multi_head_attention.5} parent=11 // pred_check_branch
          %215 = sbr.rel (%p213) target = $region20
        $region19: #{multi_head_attention.5} parent=11 // pred_region
          _
        $region20: #{multi_head_attention.5} parent=11 // pred_fallthru
          _
        // Predicated region
        $region21: #{multi_head_attention.5} parent=11 // pred_check
          %p216 = pneg %p146
        $region22: #{multi_head_attention.5} parent=11 // pred_check_branch
          %218 = sbr.rel (%p216) target = $region24
        $region23: #{multi_head_attention.5} parent=11 // pred_region
          _
        $region24: #{multi_head_attention.5} parent=11 // pred_fallthru
          _
        // Predicated region
        $region25: #{multi_head_attention.5} parent=11 // pred_check
          %p219 = pneg %p167
        $region26: #{multi_head_attention.5} parent=11 // pred_check_branch
          %221 = sbr.rel (%p219) target = $region28
        $region27: #{multi_head_attention.5} parent=11 // pred_region
          _
        $region28: #{multi_head_attention.5} parent=11 // pred_fallthru
          _
      $region12: #{multi_head_attention.5} parent=5 // pred_fallthru
        _
      %p222 = scmp.lt.s32.totalorder %s15, 2
      // Predicated region
      $region29: #{multi_head_attention.5} parent=5 // pred_check
        %p223 = pneg %p222
      $region30: #{multi_head_attention.5} parent=5 // pred_check_branch
        %225 = sbr.rel (%p223) target = $region32
      $region31: #{multi_head_attention.5} parent=5 // pred_region
        // Predicated region
        $region33: #{multi_head_attention.5} parent=31 // pred_check
          %p226 = pneg %p49
        $region34: #{multi_head_attention.5} parent=31 // pred_check_branch
          %228 = sbr.rel (%p226) target = $region36
        $region35: #{multi_head_attention.5} parent=31 // pred_region
          %p229 = scmp.lt.s32.totalorder %s22, 1
          %s230 = scalar_select %p229, %s22, 1
          %p231 = scmp.lt.s32.totalorder %s23, 0
          %s232 = scalar_select %p231, %s23, 0
          %s233 = sadd.s32 %s232, %s230
          %s234 = smul.addr %s233, 4
          %s235 = scalar_lea.vmem %s0, %s234
        $region36: #{multi_head_attention.5} parent=31 // pred_fallthru
          _
        // Predicated region
        $region37: #{multi_head_attention.5} parent=31 // pred_check
          %p236 = pneg %p119
        $region38: #{multi_head_attention.5} parent=31 // pred_check_branch
          %238 = sbr.rel (%p236) target = $region40
        $region39: #{multi_head_attention.5} parent=31 // pred_region
          %p239 = scmp.lt.s32.totalorder %s22, 1
          %s240 = scalar_select %p239, %s22, 1
          %p241 = scmp.lt.s32.totalorder %s23, 0
          %s242 = scalar_select %p241, %s23, 0
          %s243 = sadd.s32 %s242, %s240
          %s244 = smul.addr %s243, 8
          %s245 = scalar_lea.vmem %s3, %s244
        $region40: #{multi_head_attention.5} parent=31 // pred_fallthru
          _
      $region32: #{multi_head_attention.5} parent=5 // pred_fallthru
        _
      %p246 = scmp.le.s32.totalorder 1, %s15
      %p247 = scmp.lt.s32.totalorder %s15, 3
      %p248 = pnand %p246, %p247
      %p249 = pneg %p248
      // Predicated region
      $region41: #{multi_head_attention.5} parent=5 // pred_check
        _
      $region42: #{multi_head_attention.5} parent=5 // pred_check_branch
        %251 = sbr.rel (%p248) target = $region44
      $region43: #{multi_head_attention.5} parent=5 // pred_region
        %s252 = ssub.s32 %s15, 1
        %p253 = scmp.lt.s32.totalorder %s24, 1
        %s254 = scalar_select %p253, %s24, 1
        %p255 = scmp.lt.s32.totalorder %s25, 0
        %s256 = scalar_select %p255, %s25, 0
        %s257 = sadd.s32 %s256, %s254
        %s258 = smul.addr %s257, 4
        %s259 = scalar_lea.vmem %s0, %s258
        %p260 = pneg %p55
        %p261 = pneg %p52
        %p262 = pneg %p76
        %p263 = pneg %p73
        %p264 = pneg %p97
        %p265 = pneg %p94
        %p266 = scmp.lt.s32.totalorder %s24, 1
        %s267 = scalar_select %p266, %s24, 1
        %p268 = scmp.lt.s32.totalorder %s25, 0
        %s269 = scalar_select %p268, %s25, 0
        %s270 = sadd.s32 %s269, %s267
        %s271 = smul.addr %s270, 8
        %s272 = scalar_lea.vmem %s3, %s271
        %p273 = pneg %p125
        %p274 = pneg %p122
        %p275 = pneg %p146
        %p276 = pneg %p143
        %p277 = pneg %p167
        %p278 = pneg %p164
        %p279 = pneg %p195
        %p280 = pneg %p192
        %s281 = sand.u32 %s182, 1
        %s282 = scalar_lea.sflag [#allocation3], %s281
        %s283 = sand.u32 %s182, 1
        %s284 = smul.addr %s283, 8
        %s285 = scalar_lea.vmem [#allocation2], %s284
        %p286 = scmp.lt.s32.totalorder %s24, 1
        %s287 = scalar_select %p286, %s24, 1
        %p288 = scmp.lt.s32.totalorder %s25, 0
        %s289 = scalar_select %p288, %s25, 0
        %s290 = sadd.s32 %s289, %s287
        %s291 = smul.addr %s290, 4
        %s292 = scalar_lea.vmem %s0, %s291
        %p293 = scmp.lt.s32.totalorder %s24, 1
        %s294 = scalar_select %p293, %s24, 1
        %p295 = scmp.lt.s32.totalorder %s25, 0
        %s296 = scalar_select %p295, %s25, 0
        %s297 = sadd.s32 %s296, %s294
        %s298 = smul.addr %s297, 8
        %s299 = scalar_lea.vmem %s3, %s298
        %v301 = vld [vmem:[%s292] sm:$0xf]
        %v302 = vld [vmem:[%s1] sm:$0xf]
        %v303 = vld [vmem:[%s1 + $0x4] sm:$0xf]
        %v304 = vld [vmem:[%s1 + $0x8] sm:$0xf]
        %v305 = vld [vmem:[%s1 + $0xc] sm:$0xf]
        %v306 = vld [vmem:[%s2] sm:$0x1]
        %v308 = vlaneseq
        %v309 = vshrl.u32 %v308, 7
        %v310 = vsub.s32 0, %v309
        %v311 = vrot.slane %v306, %v310
        %v317 = vunpack.c.l.b16 %v302
        %v318 = vunpack.c.l.b16 %v303
        %v319 = vunpack.c.l.b16 %v304
        %v320 = vunpack.c.l.b16 %v305
        %v321 = vpack.c.b16 %v318, %v317
        %v322 = vpack.c.b16 %v320, %v319
        %vm325 = vcmask 261120
        %v327 = vsel %vm325, %v301, 0
        %329 = vmatprep.subr.bf16.mxu0 0
        %330 = vmatpush1.bf16.msra.mxu0 %v321
        %331 = vmatprep.subr.bf16.mxu0 0
        %332 = vmatpush1.bf16.msra.mxu0 %v322
        %333 = vmatprep.subr.bf16.mxu0 0
        %334 = vmatpush1.bf16.msra.mxu0 0
        %335 = vmatprep.subr.bf16.mxu0 0
        %336 = vmatpush1.bf16.msra.mxu0 0
        %337 = vmatprep.subr.bf16.mxu0 0
        %338 = vmatpush1.bf16.msra.mxu0 0
        %339 = vmatprep.subr.bf16.mxu0 0
        %340 = vmatpush1.bf16.msra.mxu0 0
        %341 = vmatprep.subr.bf16.mxu0 0
        %342 = vmatpush1.bf16.msra.mxu0 0
        %343 = vmatprep.subr.bf16.mxu0 0
        %344 = vmatpush1.bf16.msra.mxu0 0
        %345 = vmatprep.subr.bf16.mxu0 0
        %346 = vmatpush1.bf16.msra.mxu0 0
        %347 = vmatprep.subr.bf16.mxu0 0
        %348 = vmatpush1.bf16.msra.mxu0 0
        %349 = vmatprep.subr.bf16.mxu0 0
        %350 = vmatpush1.bf16.msra.mxu0 0
        %351 = vmatprep.subr.bf16.mxu0 0
        %352 = vmatpush1.bf16.msra.mxu0 0
        %353 = vmatprep.subr.bf16.mxu0 0
        %354 = vmatpush1.bf16.msra.mxu0 0
        %355 = vmatprep.subr.bf16.mxu0 0
        %356 = vmatpush1.bf16.msra.mxu0 0
        %357 = vmatprep.subr.bf16.mxu0 0
        %358 = vmatpush1.bf16.msra.mxu0 0
        %359 = vmatprep.subr.bf16.mxu0 0
        %360 = vmatpush1.bf16.msra.mxu0 0
        %361 = vmatprep.mubr.bf16.mxu0 0
        %362 = vmatmul.mubr.bf16.gmra.mrb[0].mxu0 %v327
        %v363 = vpop.f32.mrb[0].mxu0
        %v364 = vadd.f32 %v311, %v363
        %v365 = vpop.f32.mrb[0].mxu0
        %v366 = vpop.f32.mrb[0].mxu0
        %v367 = vpop.f32.mrb[0].mxu0
        %368 = vdwg.mxu0
        %v369 = vld [vmem:[%s299] sm:$0xff]
        %v370 = vadd.f32 %v369, %v364
        %v371 = vsel %vm325, %v370, 0.0
        %372 = vadd.xlane.f32.xlu0 %v371
        %v373 = vpop.xlane.xlu0 %372
        %v374 = vrcp.pop 32.0
        %v375 = vmul.f32 %v373, %v374
        %v376 = vsub.f32 %v370, %v375
        %v377 = vmul.f32 %v376, %v376
        %v378 = vsel %vm325, %v377, 0.0
        %379 = vadd.xlane.f32.xlu0 %v378
        %v380 = vpop.xlane.xlu0 %379
        %v381 = vmul.f32 %v380, %v374
        %v382 = vadd.f32 %v381, 1e-05
        %v383 = vrsqrt.pop %v382
        %v384 = vmul.f32 %v376, %v383
        %v385 = vld [vmem:[%s4] sm:$0x1]
        %v387 = vlaneseq
        %v388 = vshrl.u32 %v387, 7
        %v389 = vsub.s32 0, %v388
        %v390 = vrot.slane %v385, %v389
        %v392 = vmul.f32 %v384, %v390
        %v393 = vld [vmem:[%s5] sm:$0x1]
        %v395 = vlaneseq
        %v396 = vshrl.u32 %v395, 7
        %v397 = vsub.s32 0, %v396
        %v398 = vrot.slane %v393, %v397
        %v400 = vadd.f32 %v392, %v398
        %401 = vst.msk [vmem:[%s285] sm:$0xff] %vm325, %v400
        %s402 = sand.u32 %s182, 1
        %s403 = scalar_lea.sflag [#allocation3], %s402
        %s404 = sand.u32 %s182, 1
        %s405 = smul.addr %s404, 8
        %s406 = scalar_lea.vmem [#allocation2], %s405
        // Predicated region
        $region45: #{multi_head_attention.5} parent=43 // pred_check
          %p407 = pneg %p192
        $region46: #{multi_head_attention.5} parent=43 // pred_check_branch
          %409 = sbr.rel (%p407) target = $region48
        $region47: #{multi_head_attention.5} parent=43 // pred_region
          %s411 = ssub.s32 128, 128
          %412 = vsyncadd %s403, %s411
          %s413 = sadd.s32 %s25, %s24
          %s414 = smul.addr %s413, 128
          %s415 = scalar_lea.hbm %s6, %s414
          %s417 = sshll.u32 %s406, 4
          %s418 = int_to_ptr.vmem [resolvable:$true] %s417
          %420 = dma.vmem_to_hbm [thread:$0]  %s418, 128, %s415, %s403
        $region48: #{multi_head_attention.5} parent=43 // pred_fallthru
          _
      $region44: #{multi_head_attention.5} parent=5 // pred_fallthru
        _
      %p421 = scmp.le.s32.totalorder 2, %s15
      // Predicated region
      $region49: #{multi_head_attention.5} parent=5 // pred_check
        %p422 = pneg %p421
      $region50: #{multi_head_attention.5} parent=5 // pred_check_branch
        %424 = sbr.rel (%p422) target = $region52
      $region51: #{multi_head_attention.5} parent=5 // pred_region
        %s425 = ssub.s32 %s15, 2
        // Predicated region
        $region53: #{multi_head_attention.5} parent=51 // pred_check
          %p426 = pneg %p198
        $region54: #{multi_head_attention.5} parent=51 // pred_check_branch
          %428 = sbr.rel (%p426) target = $region56
        $region55: #{multi_head_attention.5} parent=51 // pred_region
          %s429 = sand.u32 %s183, 1
          %s430 = scalar_lea.sflag [#allocation3], %s429
          %s431 = sand.u32 %s183, 1
          %s432 = smul.addr %s431, 8
          %s433 = scalar_lea.vmem [#allocation2], %s432
          %434 = dma.done %s430, 128
        $region56: #{multi_head_attention.5} parent=51 // pred_fallthru
          _
      $region52: #{multi_head_attention.5} parent=5 // pred_fallthru
        _
    $region6: #{multi_head_attention.5} parent=1 // loop_footer
      %s19 = sadd.s32 1, %s15
    $region7: #{multi_head_attention.5} parent=1 // loop_footer_branch
      %14 = sbr.rel target = $region3
    $region8: #{multi_head_attention.5} parent=1 // loop_exit
      _
    %435 = vsyncpa [#allocation3], 1
    %s436 = scalar_lea.sflag [#allocation3], 1
    %437 = vsyncpa %s436, 1

// kernel: multi_head_attention.4
$region0: #{multi_head_attention.4}
  #allocation0 [shape = 'u32[]', space=smem, size = 0x4, offset = 0x4, fixed_abs, tag = 'smem constant byte address 0x4 - core index']
  #allocation1 [shape = 'u32[144,128]{1,0:T(1,128)}', space=vmem, size = 0x12000, scoped, tag = 'internal scratch']
  %s0 = inlined_call_operand.vmem [shape: bf16[8,8,8], index: 0, kind: input, shape index: {}]
  %s1 = inlined_call_operand.vmem [shape: bf16[8,8,8], index: 1, kind: input, shape index: {}]
  %s2 = inlined_call_operand.vmem [shape: bf16[8,8,8], index: 2, kind: input, shape index: {}]
  %s3 = inlined_call_operand.vmem [shape: bf16[8,8,8], index: 3, kind: output, shape index: {0}]
  %s4 = inlined_call_operand.hbm [shape: f32[8,8,8], index: 4, kind: output, shape index: {1}]
  %5 = xla_tuple %s3, %s4
  %s6 = sld [smem:[#allocation0]]
  $region53: #{multi_head_attention.4} parent=0
    _
  %s8 = ssub.s32 1, %s6
  %s9 = scalar_select 0, %s8, %s6
  $region1: #{multi_head_attention.4} parent=0
    #allocation2 [shape = 'u8[8192]{0}', space=vmem, size = 0x2000, scoped, tag = 'output window, operand 1']
    #allocation3 [shape = 's32[2]{0}', space=sflag, size = 0x8, scoped, tag = 'scoped memory for multi_head_attention.4']
    %10 = vsyncpa [#allocation3], 0
    %s11 = scalar_lea.sflag [#allocation3], 1
    %12 = vsyncpa %s11, 0
    loop: start=0, step=1, limit=10
    $region2: #{multi_head_attention.4} parent=1 // loop_pre_header
      _
    $region3: #{multi_head_attention.4} parent=1 // loop_header
      %s14 = sphi 0, %s18
      %p15 = scmp.ge.s32.totalorder %s14, 10
      %s21 = sphi 0, %s33
      %s22 = sphi 0, %s29
      %s23 = sphi 0, %s21
      %s24 = sphi 0, %s22
      %s25 = sphi 0, %s23
      %s26 = sphi 0, %s24
      %s38 = sphi 0, %s40
      %s41 = sphi 0, %s38
      %s42 = sphi 0, %s41
      %s58 = sphi 0, %s42
      %s64 = sphi 0, %s66
      %s67 = sphi 0, %s64
      %s68 = sphi 0, %s67
      %s84 = sphi 0, %s68
      %s90 = sphi 0, %s92
      %s93 = sphi 0, %s90
      %s94 = sphi 0, %s93
      %s110 = sphi 0, %s94
      %s118 = sphi 0, %s120
      %s121 = sphi 0, %s118
      %s122 = sphi 0, %s121
      %s138 = sphi 0, %s122
      %s146 = sphi 0, %s148
      %s149 = sphi 0, %s146
      %s150 = sphi 0, %s149
      %s166 = sphi 0, %s150
    $region4: #{multi_head_attention.4} parent=1 // loop_header_branch
      %17 = sbr.rel (%p15) target = $region8
    $region5: #{multi_head_attention.4} parent=1 // loop_body
      %s19 = ssub.s32 %s14, 1
      %s20 = ssub.s32 %s14, 2
      %s27 = sadd.s32 1, %s22
      %p28 = scmp.ge.s32.totalorder %s27, 1
      %s29 = scalar_select %p28, 0, %s27
      %s30 = sadd.s32 1, %s21
      %s31 = scalar_select %p28, %s30, %s21
      %p32 = scmp.ge.s32.totalorder %s31, 8
      %s33 = scalar_select %p32, 0, %s31
      %s34 = ssub.s32 %s21, %s33
      %s35 = ssub.s32 %s22, %s29
      %s36 = sor.u32 %s34, %s35
      %p37 = scmp.eq.s32.totalorder %s36, 0
      %s39 = sadd.s32 %s38, 1
      %s40 = scalar_select %p37, %s38, %s39
      %p43 = pneg %p37
      %p44 = scmp.eq.s32.totalorder %s14, 7
      %p45 = por %p43, %p44
      %p46 = scmp.ne.s32.totalorder %s38, %s41
      %p47 = scmp.eq.s32.totalorder %s14, 0
      %p48 = por %p46, %p47
      %p49 = scmp.ne.s32.totalorder %s38, %s41
      %p50 = scmp.eq.s32.totalorder %s19, 7
      %p51 = por %p49, %p50
      %p52 = scmp.ne.s32.totalorder %s41, %s42
      %p53 = scmp.eq.s32.totalorder %s19, 0
      %p54 = por %p52, %p53
      %p55 = scmp.ne.s32.totalorder %s41, %s42
      %p56 = scmp.eq.s32.totalorder %s20, 7
      %p57 = por %p55, %p56
      %p59 = scmp.ne.s32.totalorder %s42, %s58
      %p60 = scmp.eq.s32.totalorder %s20, 0
      %p61 = por %p59, %p60
      %s62 = ssub.s32 %s21, %s33
      %p63 = scmp.eq.s32.totalorder %s62, 0
      %s65 = sadd.s32 %s64, 1
      %s66 = scalar_select %p63, %s64, %s65
      %p69 = pneg %p63
      %p70 = scmp.eq.s32.totalorder %s14, 7
      %p71 = por %p69, %p70
      %p72 = scmp.ne.s32.totalorder %s64, %s67
      %p73 = scmp.eq.s32.totalorder %s14, 0
      %p74 = por %p72, %p73
      %p75 = scmp.ne.s32.totalorder %s64, %s67
      %p76 = scmp.eq.s32.totalorder %s19, 7
      %p77 = por %p75, %p76
      %p78 = scmp.ne.s32.totalorder %s67, %s68
      %p79 = scmp.eq.s32.totalorder %s19, 0
      %p80 = por %p78, %p79
      %p81 = scmp.ne.s32.totalorder %s67, %s68
      %p82 = scmp.eq.s32.totalorder %s20, 7
      %p83 = por %p81, %p82
      %p85 = scmp.ne.s32.totalorder %s68, %s84
      %p86 = scmp.eq.s32.totalorder %s20, 0
      %p87 = por %p85, %p86
      %s88 = ssub.s32 %s21, %s33
      %p89 = scmp.eq.s32.totalorder %s88, 0
      %s91 = sadd.s32 %s90, 1
      %s92 = scalar_select %p89, %s90, %s91
      %p95 = pneg %p89
      %p96 = scmp.eq.s32.totalorder %s14, 7
      %p97 = por %p95, %p96
      %p98 = scmp.ne.s32.totalorder %s90, %s93
      %p99 = scmp.eq.s32.totalorder %s14, 0
      %p100 = por %p98, %p99
      %p101 = scmp.ne.s32.totalorder %s90, %s93
      %p102 = scmp.eq.s32.totalorder %s19, 7
      %p103 = por %p101, %p102
      %p104 = scmp.ne.s32.totalorder %s93, %s94
      %p105 = scmp.eq.s32.totalorder %s19, 0
      %p106 = por %p104, %p105
      %p107 = scmp.ne.s32.totalorder %s93, %s94
      %p108 = scmp.eq.s32.totalorder %s20, 7
      %p109 = por %p107, %p108
      %p111 = scmp.ne.s32.totalorder %s94, %s110
      %p112 = scmp.eq.s32.totalorder %s20, 0
      %p113 = por %p111, %p112
      %s114 = ssub.s32 %s21, %s33
      %s115 = ssub.s32 %s22, %s29
      %s116 = sor.u32 %s114, %s115
      %p117 = scmp.eq.s32.totalorder %s116, 0
      %s119 = sadd.s32 %s118, 1
      %s120 = scalar_select %p117, %s118, %s119
      %p123 = pneg %p117
      %p124 = scmp.eq.s32.totalorder %s14, 7
      %p125 = por %p123, %p124
      %p126 = scmp.ne.s32.totalorder %s118, %s121
      %p127 = scmp.eq.s32.totalorder %s14, 0
      %p128 = por %p126, %p127
      %p129 = scmp.ne.s32.totalorder %s118, %s121
      %p130 = scmp.eq.s32.totalorder %s19, 7
      %p131 = por %p129, %p130
      %p132 = scmp.ne.s32.totalorder %s121, %s122
      %p133 = scmp.eq.s32.totalorder %s19, 0
      %p134 = por %p132, %p133
      %p135 = scmp.ne.s32.totalorder %s121, %s122
      %p136 = scmp.eq.s32.totalorder %s20, 7
      %p137 = por %p135, %p136
      %p139 = scmp.ne.s32.totalorder %s122, %s138
      %p140 = scmp.eq.s32.totalorder %s20, 0
      %p141 = por %p139, %p140
      %s142 = ssub.s32 %s21, %s33
      %s143 = ssub.s32 %s22, %s29
      %s144 = sor.u32 %s142, %s143
      %p145 = scmp.eq.s32.totalorder %s144, 0
      %s147 = sadd.s32 %s146, 1
      %s148 = scalar_select %p145, %s146, %s147
      %p151 = pneg %p145
      %p152 = scmp.eq.s32.totalorder %s14, 7
      %p153 = por %p151, %p152
      %p154 = scmp.ne.s32.totalorder %s146, %s149
      %p155 = scmp.eq.s32.totalorder %s14, 0
      %p156 = por %p154, %p155
      %p157 = scmp.ne.s32.totalorder %s146, %s149
      %p158 = scmp.eq.s32.totalorder %s19, 7
      %p159 = por %p157, %p158
      %p160 = scmp.ne.s32.totalorder %s149, %s150
      %p161 = scmp.eq.s32.totalorder %s19, 0
      %p162 = por %p160, %p161
      %p163 = scmp.ne.s32.totalorder %s149, %s150
      %p164 = scmp.eq.s32.totalorder %s20, 7
      %p165 = por %p163, %p164
      %p167 = scmp.ne.s32.totalorder %s150, %s166
      %p168 = scmp.eq.s32.totalorder %s20, 0
      %p169 = por %p167, %p168
      %p170 = scmp.le.s32.totalorder 1, %s14
      %p171 = scmp.lt.s32.totalorder %s14, 9
      %p172 = pnand %p170, %p171
      %p173 = pneg %p172
      // Predicated region
      $region9: #{multi_head_attention.4} parent=5 // pred_check
        _
      $region10: #{multi_head_attention.4} parent=5 // pred_check_branch
        %175 = sbr.rel (%p172) target = $region12
      $region11: #{multi_head_attention.4} parent=5 // pred_region
        %s176 = ssub.s32 %s14, 1
      $region12: #{multi_head_attention.4} parent=5 // pred_fallthru
        _
      %p177 = scmp.lt.s32.totalorder %s14, 8
      // Predicated region
      $region13: #{multi_head_attention.4} parent=5 // pred_check
        %p178 = pneg %p177
      $region14: #{multi_head_attention.4} parent=5 // pred_check_branch
        %180 = sbr.rel (%p178) target = $region16
      $region15: #{multi_head_attention.4} parent=5 // pred_region
        // Predicated region
        $region17: #{multi_head_attention.4} parent=15 // pred_check
          %p181 = pneg %p48
        $region18: #{multi_head_attention.4} parent=15 // pred_check_branch
          %183 = sbr.rel (%p181) target = $region20
        $region19: #{multi_head_attention.4} parent=15 // pred_region
          %p184 = scmp.lt.s32.totalorder %s21, 7
          %s185 = scalar_select %p184, %s21, 7
          %p186 = scmp.lt.s32.totalorder %s22, 0
          %s187 = scalar_select %p186, %s22, 0
          %s188 = sadd.s32 %s187, %s185
          %s189 = smul.addr %s188, 4
          %s190 = scalar_lea.vmem %s0, %s189
        $region20: #{multi_head_attention.4} parent=15 // pred_fallthru
          _
        // Predicated region
        $region21: #{multi_head_attention.4} parent=15 // pred_check
          %p191 = pneg %p74
        $region22: #{multi_head_attention.4} parent=15 // pred_check_branch
          %193 = sbr.rel (%p191) target = $region24
        $region23: #{multi_head_attention.4} parent=15 // pred_region
          %p194 = scmp.lt.s32.totalorder %s21, 7
          %s195 = scalar_select %p194, %s21, 7
          %s196 = smul.addr %s195, 4
          %s197 = scalar_lea.vmem %s1, %s196
        $region24: #{multi_head_attention.4} parent=15 // pred_fallthru
          _
        // Predicated region
        $region25: #{multi_head_attention.4} parent=15 // pred_check
          %p198 = pneg %p100
        $region26: #{multi_head_attention.4} parent=15 // pred_check_branch
          %200 = sbr.rel (%p198) target = $region28
        $region27: #{multi_head_attention.4} parent=15 // pred_region
          %p201 = scmp.lt.s32.totalorder %s21, 7
          %s202 = scalar_select %p201, %s21, 7
          %s203 = smul.addr %s202, 4
          %s204 = scalar_lea.vmem %s2, %s203
        $region28: #{multi_head_attention.4} parent=15 // pred_fallthru
          _
      $region16: #{multi_head_attention.4} parent=5 // pred_fallthru
        _
      %p205 = scmp.le.s32.totalorder 1, %s14
      %p206 = scmp.lt.s32.totalorder %s14, 9
      %p207 = pnand %p205, %p206
      %p208 = pneg %p207
      // Predicated region
      $region29: #{multi_head_attention.4} parent=5 // pred_check
        _
      $region30: #{multi_head_attention.4} parent=5 // pred_check_branch
        %210 = sbr.rel (%p207) target = $region32
      $region31: #{multi_head_attention.4} parent=5 // pred_region
        %s211 = ssub.s32 %s14, 1
        %p212 = scmp.lt.s32.totalorder %s23, 7
        %s213 = scalar_select %p212, %s23, 7
        %p214 = scmp.lt.s32.totalorder %s24, 0
        %s215 = scalar_select %p214, %s24, 0
        %s216 = sadd.s32 %s215, %s213
        %s217 = smul.addr %s216, 4
        %s218 = scalar_lea.vmem %s0, %s217
        %p219 = pneg %p54
        %p220 = pneg %p51
        %p221 = scmp.lt.s32.totalorder %s23, 7
        %s222 = scalar_select %p221, %s23, 7
        %s223 = smul.addr %s222, 4
        %s224 = scalar_lea.vmem %s1, %s223
        %p225 = pneg %p80
        %p226 = pneg %p77
        %p227 = scmp.lt.s32.totalorder %s23, 7
        %s228 = scalar_select %p227, %s23, 7
        %s229 = smul.addr %s228, 4
        %s230 = scalar_lea.vmem %s2, %s229
        %p231 = pneg %p106
        %p232 = pneg %p103
        %p233 = pneg %p134
        %p234 = pneg %p131
        %p235 = scmp.lt.s32.totalorder %s23, 7
        %s236 = scalar_select %p235, %s23, 7
        %p237 = scmp.lt.s32.totalorder %s24, 0
        %s238 = scalar_select %p237, %s24, 0
        %s239 = sadd.s32 %s238, %s236
        %s240 = smul.addr %s239, 4
        %s241 = scalar_lea.vmem %s3, %s240
        %p242 = pneg %p162
        %p243 = pneg %p159
        %s244 = sand.u32 %s149, 1
        %s245 = scalar_lea.sflag [#allocation3], %s244
        %s246 = sand.u32 %s149, 1
        %s247 = smul.addr %s246, 8
        %s248 = scalar_lea.vmem [#allocation2], %s247
        %p249 = scmp.lt.s32.totalorder %s23, 7
        %s250 = scalar_select %p249, %s23, 7
        %p251 = scmp.lt.s32.totalorder %s24, 0
        %s252 = scalar_select %p251, %s24, 0
        %s253 = sadd.s32 %s252, %s250
        %s254 = smul.addr %s253, 4
        %s255 = scalar_lea.vmem %s0, %s254
        %p256 = scmp.lt.s32.totalorder %s23, 7
        %s257 = scalar_select %p256, %s23, 7
        %s258 = smul.addr %s257, 4
        %s259 = scalar_lea.vmem %s1, %s258
        %p260 = scmp.lt.s32.totalorder %s23, 7
        %s261 = scalar_select %p260, %s23, 7
        %s262 = smul.addr %s261, 4
        %s263 = scalar_lea.vmem %s2, %s262
        %p264 = scmp.lt.s32.totalorder %s23, 7
        %s265 = scalar_select %p264, %s23, 7
        %p266 = scmp.lt.s32.totalorder %s24, 0
        %s267 = scalar_select %p266, %s24, 0
        %s268 = sadd.s32 %s267, %s265
        %s269 = smul.addr %s268, 4
        %s270 = scalar_lea.vmem %s3, %s269
        %v272 = vld [vmem:[%s255] sm:$0xf]
        %v273 = vld [vmem:[%s259] sm:$0xf]
        %v274 = vld [vmem:[%s263] sm:$0xf]
        %vm275 = vcmask 64512
        %v277 = vsel %vm275, %v272, 0
        %v280 = vsel %vm275, %v273, 0
        %282 = vmatprep.subr.bf16.mxu0 0
        %283 = vmatpush1.bf16.xpose.msra.mxu0 %v280
        %284 = vmatprep.subr.bf16.mxu0 0
        %285 = vmatpush1.bf16.xpose.msra.mxu0 0
        %286 = vmatprep.subr.bf16.mxu0 0
        %287 = vmatpush1.bf16.xpose.msra.mxu0 0
        %288 = vmatprep.subr.bf16.mxu0 0
        %289 = vmatpush1.bf16.xpose.msra.mxu0 0
        %290 = vmatprep.subr.bf16.mxu0 0
        %291 = vmatpush1.bf16.xpose.msra.mxu0 0
        %292 = vmatprep.subr.bf16.mxu0 0
        %293 = vmatpush1.bf16.xpose.msra.mxu0 0
        %294 = vmatprep.subr.bf16.mxu0 0
        %295 = vmatpush1.bf16.xpose.msra.mxu0 0
        %296 = vmatprep.subr.bf16.mxu0 0
        %297 = vmatpush1.bf16.xpose.msra.mxu0 0
        %298 = vmatprep.subr.bf16.mxu0 0
        %299 = vmatpush1.bf16.xpose.msra.mxu0 0
        %300 = vmatprep.subr.bf16.mxu0 0
        %301 = vmatpush1.bf16.xpose.msra.mxu0 0
        %302 = vmatprep.subr.bf16.mxu0 0
        %303 = vmatpush1.bf16.xpose.msra.mxu0 0
        %304 = vmatprep.subr.bf16.mxu0 0
        %305 = vmatpush1.bf16.xpose.msra.mxu0 0
        %306 = vmatprep.subr.bf16.mxu0 0
        %307 = vmatpush1.bf16.xpose.msra.mxu0 0
        %308 = vmatprep.subr.bf16.mxu0 0
        %309 = vmatpush1.bf16.xpose.msra.mxu0 0
        %310 = vmatprep.subr.bf16.mxu0 0
        %311 = vmatpush1.bf16.xpose.msra.mxu0 0
        %312 = vmatprep.subr.bf16.mxu0 0
        %313 = vmatpush1.bf16.xpose.msra.mxu0 0
        %314 = vmatprep.mubr.bf16.mxu0 0
        %315 = vmatmul.mubr.bf16.gmra.mrb[0].mxu0 %v277
        %v316 = vpop.f32.mrb[0].mxu0
        %v317 = vadd.f32 0.0, %v316
        %v318 = vpop.f32.mrb[0].mxu0
        %v319 = vpop.f32.mrb[0].mxu0
        %v320 = vpop.f32.mrb[0].mxu0
        %321 = vdwg.mxu0
        %v322 = vsel %vm275, %v317, -inf
        %323 = vmax.xlane.f32.xlu0 %v322
        %v324 = vpop.xlane.xlu0 %323
        %v325 = vsub.f32 %v317, %v324
        %v326 = vmul.f32 %v325, 1.442695
        %v327 = vpow.pop %v326
        %v328 = vsel %vm275, %v327, 0.0
        %329 = vadd.xlane.f32.xlu0 %v328
        %v330 = vpop.xlane.xlu0 %329
        %v331 = vrcp.pop %v330
        %v332 = vpack.c.bf16 %v327, %v327
        %v334 = vsel %vm275, %v332, 0
        %vm336 = vcmask 1043456
        %v338 = vsel %vm336, %v274, 0
        %340 = vmatprep.subr.bf16.mxu0 0
        %341 = vmatpush1.bf16.msra.mxu0 %v338
        %342 = vmatprep.subr.bf16.mxu0 0
        %343 = vmatpush1.bf16.msra.mxu0 0
        %344 = vmatprep.subr.bf16.mxu0 0
        %345 = vmatpush1.bf16.msra.mxu0 0
        %346 = vmatprep.subr.bf16.mxu0 0
        %347 = vmatpush1.bf16.msra.mxu0 0
        %348 = vmatprep.subr.bf16.mxu0 0
        %349 = vmatpush1.bf16.msra.mxu0 0
        %350 = vmatprep.subr.bf16.mxu0 0
        %351 = vmatpush1.bf16.msra.mxu0 0
        %352 = vmatprep.subr.bf16.mxu0 0
        %353 = vmatpush1.bf16.msra.mxu0 0
        %354 = vmatprep.subr.bf16.mxu0 0
        %355 = vmatpush1.bf16.msra.mxu0 0
        %356 = vmatprep.subr.bf16.mxu0 0
        %357 = vmatpush1.bf16.msra.mxu0 0
        %358 = vmatprep.subr.bf16.mxu0 0
        %359 = vmatpush1.bf16.msra.mxu0 0
        %360 = vmatprep.subr.bf16.mxu0 0
        %361 = vmatpush1.bf16.msra.mxu0 0
        %362 = vmatprep.subr.bf16.mxu0 0
        %363 = vmatpush1.bf16.msra.mxu0 0
        %364 = vmatprep.subr.bf16.mxu0 0
        %365 = vmatpush1.bf16.msra.mxu0 0
        %366 = vmatprep.subr.bf16.mxu0 0
        %367 = vmatpush1.bf16.msra.mxu0 0
        %368 = vmatprep.subr.bf16.mxu0 0
        %369 = vmatpush1.bf16.msra.mxu0 0
        %370 = vmatprep.subr.bf16.mxu0 0
        %371 = vmatpush1.bf16.msra.mxu0 0
        %372 = vmatprep.mubr.bf16.mxu0 0
        %373 = vmatmul.mubr.bf16.gmra.mrb[0].mxu0 %v334
        %v374 = vpop.f32.mrb[0].mxu0
        %v375 = vadd.f32 0.0, %v374
        %v376 = vpop.f32.mrb[0].mxu0
        %v377 = vpop.f32.mrb[0].mxu0
        %v378 = vpop.f32.mrb[0].mxu0
        %379 = vdwg.mxu0
        %v380 = vmul.f32 %v375, %v331
        %v381 = vpack.c.bf16 %v380, %v380
        %vm382 = vcmask 60416
        %383 = vst.msk [vmem:[%s270] sm:$0xf] %vm382, %v381
        %v384 = vmul.f32 %v327, %v331
        %385 = vst.msk [vmem:[%s248] sm:$0xff] %vm275, %v384
        %p386 = scmp.lt.s32.totalorder %s23, 7
        %s387 = scalar_select %p386, %s23, 7
        %p388 = scmp.lt.s32.totalorder %s24, 0
        %s389 = scalar_select %p388, %s24, 0
        %s390 = sadd.s32 %s389, %s387
        %s391 = smul.addr %s390, 4
        %s392 = scalar_lea.vmem %s3, %s391
        %s393 = sand.u32 %s149, 1
        %s394 = scalar_lea.sflag [#allocation3], %s393
        %s395 = sand.u32 %s149, 1
        %s396 = smul.addr %s395, 8
        %s397 = scalar_lea.vmem [#allocation2], %s396
        // Predicated region
        $region33: #{multi_head_attention.4} parent=31 // pred_check
          %p398 = pneg %p131
        $region34: #{multi_head_attention.4} parent=31 // pred_check_branch
          %400 = sbr.rel (%p398) target = $region36
        $region35: #{multi_head_attention.4} parent=31 // pred_region
          _
        $region36: #{multi_head_attention.4} parent=31 // pred_fallthru
          _
        // Predicated region
        $region37: #{multi_head_attention.4} parent=31 // pred_check
          %p401 = pneg %p159
        $region38: #{multi_head_attention.4} parent=31 // pred_check_branch
          %403 = sbr.rel (%p401) target = $region40
        $region39: #{multi_head_attention.4} parent=31 // pred_region
          %s405 = ssub.s32 128, 128
          %406 = vsyncadd %s394, %s405
          %s407 = sadd.s32 %s24, %s23
          %s408 = smul.addr %s407, 128
          %s409 = scalar_lea.hbm %s4, %s408
          %s411 = sshll.u32 %s397, 4
          %s412 = int_to_ptr.vmem [resolvable:$true] %s411
          %414 = dma.vmem_to_hbm [thread:$0]  %s412, 128, %s409, %s394
        $region40: #{multi_head_attention.4} parent=31 // pred_fallthru
          _
      $region32: #{multi_head_attention.4} parent=5 // pred_fallthru
        _
      %p415 = scmp.le.s32.totalorder 2, %s14
      // Predicated region
      $region41: #{multi_head_attention.4} parent=5 // pred_check
        %p416 = pneg %p415
      $region42: #{multi_head_attention.4} parent=5 // pred_check_branch
        %418 = sbr.rel (%p416) target = $region44
      $region43: #{multi_head_attention.4} parent=5 // pred_region
        %s419 = ssub.s32 %s14, 2
        // Predicated region
        $region45: #{multi_head_attention.4} parent=43 // pred_check
          %p420 = pneg %p137
        $region46: #{multi_head_attention.4} parent=43 // pred_check_branch
          %422 = sbr.rel (%p420) target = $region48
        $region47: #{multi_head_attention.4} parent=43 // pred_region
          %p423 = scmp.lt.s32.totalorder %s25, 7
          %s424 = scalar_select %p423, %s25, 7
          %p425 = scmp.lt.s32.totalorder %s26, 0
          %s426 = scalar_select %p425, %s26, 0
          %s427 = sadd.s32 %s426, %s424
          %s428 = smul.addr %s427, 4
          %s429 = scalar_lea.vmem %s3, %s428
        $region48: #{multi_head_attention.4} parent=43 // pred_fallthru
          _
        // Predicated region
        $region49: #{multi_head_attention.4} parent=43 // pred_check
          %p430 = pneg %p165
        $region50: #{multi_head_attention.4} parent=43 // pred_check_branch
          %432 = sbr.rel (%p430) target = $region52
        $region51: #{multi_head_attention.4} parent=43 // pred_region
          %s433 = sand.u32 %s150, 1
          %s434 = scalar_lea.sflag [#allocation3], %s433
          %s435 = sand.u32 %s150, 1
          %s436 = smul.addr %s435, 8
          %s437 = scalar_lea.vmem [#allocation2], %s436
          %438 = dma.done %s434, 128
        $region52: #{multi_head_attention.4} parent=43 // pred_fallthru
          _
      $region44: #{multi_head_attention.4} parent=5 // pred_fallthru
        _
    $region6: #{multi_head_attention.4} parent=1 // loop_footer
      %s18 = sadd.s32 1, %s14
    $region7: #{multi_head_attention.4} parent=1 // loop_footer_branch
      %13 = sbr.rel target = $region3
    $region8: #{multi_head_attention.4} parent=1 // loop_exit
      _
    %439 = vsyncpa [#allocation3], 1
    %s440 = scalar_lea.sflag [#allocation3], 1
    %441 = vsyncpa %s440, 1

// kernel: multi_head_attention.3
$region0: #{multi_head_attention.3}
  #allocation0 [shape = 'u32[]', space=smem, size = 0x4, offset = 0x4, fixed_abs, tag = 'smem constant byte address 0x4 - core index']
  #allocation1 [shape = 'u32[144,128]{1,0:T(1,128)}', space=vmem, size = 0x12000, scoped, tag = 'internal scratch']
  %s0 = inlined_call_operand.vmem [shape: f32[2,8,32], index: 0, kind: input, shape index: {}]
  %s1 = inlined_call_operand.vmem [shape: f32[2,8,32], index: 1, kind: input, shape index: {}]
  %s2 = inlined_call_operand.vmem [shape: f32[2,8,32], index: 2, kind: input, shape index: {}]
  %s3 = inlined_call_operand.vmem [shape: bf16[3,32,32], index: 3, kind: input, shape index: {}]
  %s4 = inlined_call_operand.vmem [shape: f32[3,1,32], index: 4, kind: input, shape index: {}]
  %s5 = inlined_call_operand.vmem [shape: bf16[2,8,32], index: 5, kind: output, shape index: {0}]
  %s6 = inlined_call_operand.vmem [shape: bf16[2,8,32], index: 6, kind: output, shape index: {1}]
  %s7 = inlined_call_operand.vmem [shape: bf16[2,8,32], index: 7, kind: output, shape index: {2}]
  %8 = xla_tuple %s5, %s6, %s7
  %s9 = sld [smem:[#allocation0]]
  $region69: #{multi_head_attention.3} parent=0
    _
  %s11 = ssub.s32 1, %s9
  %s12 = scalar_select 0, %s11, %s9
  loop: start=0, step=1, limit=4
  $region2: #{multi_head_attention.3} parent=0 // loop_pre_header
    _
  $region3: #{multi_head_attention.3} parent=0 // loop_header
    %s14 = sphi 0, %s18
    %p15 = scmp.ge.s32.totalorder %s14, 4
    %s21 = sphi 0, %s33
    %s22 = sphi 0, %s29
    %s23 = sphi 0, %s21
    %s24 = sphi 0, %s22
    %s25 = sphi 0, %s23
    %s26 = sphi 0, %s24
    %s38 = sphi 0, %s40
    %s41 = sphi 0, %s38
    %s42 = sphi 0, %s41
    %s58 = sphi 0, %s42
    %s66 = sphi 0, %s68
    %s69 = sphi 0, %s66
    %s70 = sphi 0, %s69
    %s86 = sphi 0, %s70
    %s94 = sphi 0, %s96
    %s97 = sphi 0, %s94
    %s98 = sphi 0, %s97
    %s114 = sphi 0, %s98
    %s118 = sphi 0, %s118
    %s120 = sphi 0, %s118
    %s121 = sphi 0, %s120
    %s135 = sphi 0, %s121
    %s139 = sphi 0, %s139
    %s141 = sphi 0, %s139
    %s142 = sphi 0, %s141
    %s156 = sphi 0, %s142
    %s164 = sphi 0, %s166
    %s167 = sphi 0, %s164
    %s168 = sphi 0, %s167
    %s184 = sphi 0, %s168
    %s192 = sphi 0, %s194
    %s195 = sphi 0, %s192
    %s196 = sphi 0, %s195
    %s212 = sphi 0, %s196
    %s220 = sphi 0, %s222
    %s223 = sphi 0, %s220
    %s224 = sphi 0, %s223
    %s240 = sphi 0, %s224
  $region4: #{multi_head_attention.3} parent=0 // loop_header_branch
    %17 = sbr.rel (%p15) target = $region8
  $region5: #{multi_head_attention.3} parent=0 // loop_body
    %s19 = ssub.s32 %s14, 1
    %s20 = ssub.s32 %s14, 2
    %s27 = sadd.s32 1, %s22
    %p28 = scmp.ge.s32.totalorder %s27, 1
    %s29 = scalar_select %p28, 0, %s27
    %s30 = sadd.s32 1, %s21
    %s31 = scalar_select %p28, %s30, %s21
    %p32 = scmp.ge.s32.totalorder %s31, 2
    %s33 = scalar_select %p32, 0, %s31
    %s34 = ssub.s32 %s21, %s33
    %s35 = ssub.s32 %s22, %s29
    %s36 = sor.u32 %s34, %s35
    %p37 = scmp.eq.s32.totalorder %s36, 0
    %s39 = sadd.s32 %s38, 1
    %s40 = scalar_select %p37, %s38, %s39
    %p43 = pneg %p37
    %p44 = scmp.eq.s32.totalorder %s14, 1
    %p45 = por %p43, %p44
    %p46 = scmp.ne.s32.totalorder %s38, %s41
    %p47 = scmp.eq.s32.totalorder %s14, 0
    %p48 = por %p46, %p47
    %p49 = scmp.ne.s32.totalorder %s38, %s41
    %p50 = scmp.eq.s32.totalorder %s19, 1
    %p51 = por %p49, %p50
    %p52 = scmp.ne.s32.totalorder %s41, %s42
    %p53 = scmp.eq.s32.totalorder %s19, 0
    %p54 = por %p52, %p53
    %p55 = scmp.ne.s32.totalorder %s41, %s42
    %p56 = scmp.eq.s32.totalorder %s20, 1
    %p57 = por %p55, %p56
    %p59 = scmp.ne.s32.totalorder %s42, %s58
    %p60 = scmp.eq.s32.totalorder %s20, 0
    %p61 = por %p59, %p60
    %s62 = ssub.s32 %s21, %s33
    %s63 = ssub.s32 %s22, %s29
    %s64 = sor.u32 %s62, %s63
    %p65 = scmp.eq.s32.totalorder %s64, 0
    %s67 = sadd.s32 %s66, 1
    %s68 = scalar_select %p65, %s66, %s67
    %p71 = pneg %p65
    %p72 = scmp.eq.s32.totalorder %s14, 1
    %p73 = por %p71, %p72
    %p74 = scmp.ne.s32.totalorder %s66, %s69
    %p75 = scmp.eq.s32.totalorder %s14, 0
    %p76 = por %p74, %p75
    %p77 = scmp.ne.s32.totalorder %s66, %s69
    %p78 = scmp.eq.s32.totalorder %s19, 1
    %p79 = por %p77, %p78
    %p80 = scmp.ne.s32.totalorder %s69, %s70
    %p81 = scmp.eq.s32.totalorder %s19, 0
    %p82 = por %p80, %p81
    %p83 = scmp.ne.s32.totalorder %s69, %s70
    %p84 = scmp.eq.s32.totalorder %s20, 1
    %p85 = por %p83, %p84
    %p87 = scmp.ne.s32.totalorder %s70, %s86
    %p88 = scmp.eq.s32.totalorder %s20, 0
    %p89 = por %p87, %p88
    %s90 = ssub.s32 %s21, %s33
    %s91 = ssub.s32 %s22, %s29
    %s92 = sor.u32 %s90, %s91
    %p93 = scmp.eq.s32.totalorder %s92, 0
    %s95 = sadd.s32 %s94, 1
    %s96 = scalar_select %p93, %s94, %s95
    %p99 = pneg %p93
    %p100 = scmp.eq.s32.totalorder %s14, 1
    %p101 = por %p99, %p100
    %p102 = scmp.ne.s32.totalorder %s94, %s97
    %p103 = scmp.eq.s32.totalorder %s14, 0
    %p104 = por %p102, %p103
    %p105 = scmp.ne.s32.totalorder %s94, %s97
    %p106 = scmp.eq.s32.totalorder %s19, 1
    %p107 = por %p105, %p106
    %p108 = scmp.ne.s32.totalorder %s97, %s98
    %p109 = scmp.eq.s32.totalorder %s19, 0
    %p110 = por %p108, %p109
    %p111 = scmp.ne.s32.totalorder %s97, %s98
    %p112 = scmp.eq.s32.totalorder %s20, 1
    %p113 = por %p111, %p112
    %p115 = scmp.ne.s32.totalorder %s98, %s114
    %p116 = scmp.eq.s32.totalorder %s20, 0
    %p117 = por %p115, %p116
    %s119 = sadd.s32 %s118, 1
    %p122 = scmp.eq.s32.totalorder %s14, 1
    %p123 = scmp.ne.s32.totalorder %s118, %s120
    %p124 = scmp.eq.s32.totalorder %s14, 0
    %p125 = por %p123, %p124
    %p126 = scmp.ne.s32.totalorder %s118, %s120
    %p127 = scmp.eq.s32.totalorder %s19, 1
    %p128 = por %p126, %p127
    %p129 = scmp.ne.s32.totalorder %s120, %s121
    %p130 = scmp.eq.s32.totalorder %s19, 0
    %p131 = por %p129, %p130
    %p132 = scmp.ne.s32.totalorder %s120, %s121
    %p133 = scmp.eq.s32.totalorder %s20, 1
    %p134 = por %p132, %p133
    %p136 = scmp.ne.s32.totalorder %s121, %s135
    %p137 = scmp.eq.s32.totalorder %s20, 0
    %p138 = por %p136, %p137
    %s140 = sadd.s32 %s139, 1
    %p143 = scmp.eq.s32.totalorder %s14, 1
    %p144 = scmp.ne.s32.totalorder %s139, %s141
    %p145 = scmp.eq.s32.totalorder %s14, 0
    %p146 = por %p144, %p145
    %p147 = scmp.ne.s32.totalorder %s139, %s141
    %p148 = scmp.eq.s32.totalorder %s19, 1
    %p149 = por %p147, %p148
    %p150 = scmp.ne.s32.totalorder %s141, %s142
    %p151 = scmp.eq.s32.totalorder %s19, 0
    %p152 = por %p150, %p151
    %p153 = scmp.ne.s32.totalorder %s141, %s142
    %p154 = scmp.eq.s32.totalorder %s20, 1
    %p155 = por %p153, %p154
    %p157 = scmp.ne.s32.totalorder %s142, %s156
    %p158 = scmp.eq.s32.totalorder %s20, 0
    %p159 = por %p157, %p158
    %s160 = ssub.s32 %s21, %s33
    %s161 = ssub.s32 %s22, %s29
    %s162 = sor.u32 %s160, %s161
    %p163 = scmp.eq.s32.totalorder %s162, 0
    %s165 = sadd.s32 %s164, 1
    %s166 = scalar_select %p163, %s164, %s165
    %p169 = pneg %p163
    %p170 = scmp.eq.s32.totalorder %s14, 1
    %p171 = por %p169, %p170
    %p172 = scmp.ne.s32.totalorder %s164, %s167
    %p173 = scmp.eq.s32.totalorder %s14, 0
    %p174 = por %p172, %p173
    %p175 = scmp.ne.s32.totalorder %s164, %s167
    %p176 = scmp.eq.s32.totalorder %s19, 1
    %p177 = por %p175, %p176
    %p178 = scmp.ne.s32.totalorder %s167, %s168
    %p179 = scmp.eq.s32.totalorder %s19, 0
    %p180 = por %p178, %p179
    %p181 = scmp.ne.s32.totalorder %s167, %s168
    %p182 = scmp.eq.s32.totalorder %s20, 1
    %p183 = por %p181, %p182
    %p185 = scmp.ne.s32.totalorder %s168, %s184
    %p186 = scmp.eq.s32.totalorder %s20, 0
    %p187 = por %p185, %p186
    %s188 = ssub.s32 %s21, %s33
    %s189 = ssub.s32 %s22, %s29
    %s190 = sor.u32 %s188, %s189
    %p191 = scmp.eq.s32.totalorder %s190, 0
    %s193 = sadd.s32 %s192, 1
    %s194 = scalar_select %p191, %s192, %s193
    %p197 = pneg %p191
    %p198 = scmp.eq.s32.totalorder %s14, 1
    %p199 = por %p197, %p198
    %p200 = scmp.ne.s32.totalorder %s192, %s195
    %p201 = scmp.eq.s32.totalorder %s14, 0
    %p202 = por %p200, %p201
    %p203 = scmp.ne.s32.totalorder %s192, %s195
    %p204 = scmp.eq.s32.totalorder %s19, 1
    %p205 = por %p203, %p204
    %p206 = scmp.ne.s32.totalorder %s195, %s196
    %p207 = scmp.eq.s32.totalorder %s19, 0
    %p208 = por %p206, %p207
    %p209 = scmp.ne.s32.totalorder %s195, %s196
    %p210 = scmp.eq.s32.totalorder %s20, 1
    %p211 = por %p209, %p210
    %p213 = scmp.ne.s32.totalorder %s196, %s212
    %p214 = scmp.eq.s32.totalorder %s20, 0
    %p215 = por %p213, %p214
    %s216 = ssub.s32 %s21, %s33
    %s217 = ssub.s32 %s22, %s29
    %s218 = sor.u32 %s216, %s217
    %p219 = scmp.eq.s32.totalorder %s218, 0
    %s221 = sadd.s32 %s220, 1
    %s222 = scalar_select %p219, %s220, %s221
    %p225 = pneg %p219
    %p226 = scmp.eq.s32.totalorder %s14, 1
    %p227 = por %p225, %p226
    %p228 = scmp.ne.s32.totalorder %s220, %s223
    %p229 = scmp.eq.s32.totalorder %s14, 0
    %p230 = por %p228, %p229
    %p231 = scmp.ne.s32.totalorder %s220, %s223
    %p232 = scmp.eq.s32.totalorder %s19, 1
    %p233 = por %p231, %p232
    %p234 = scmp.ne.s32.totalorder %s223, %s224
    %p235 = scmp.eq.s32.totalorder %s19, 0
    %p236 = por %p234, %p235
    %p237 = scmp.ne.s32.totalorder %s223, %s224
    %p238 = scmp.eq.s32.totalorder %s20, 1
    %p239 = por %p237, %p238
    %p241 = scmp.ne.s32.totalorder %s224, %s240
    %p242 = scmp.eq.s32.totalorder %s20, 0
    %p243 = por %p241, %p242
    %p244 = scmp.le.s32.totalorder 1, %s14
    %p245 = scmp.lt.s32.totalorder %s14, 3
    %p246 = pnand %p244, %p245
    %p247 = pneg %p246
    // Predicated region
    $region9: #{multi_head_attention.3} parent=5 // pred_check
      _
    $region10: #{multi_head_attention.3} parent=5 // pred_check_branch
      %249 = sbr.rel (%p246) target = $region12
    $region11: #{multi_head_attention.3} parent=5 // pred_region
      %s250 = ssub.s32 %s14, 1
      // Predicated region
      $region13: #{multi_head_attention.3} parent=11 // pred_check
        %p251 = pneg %p131
      $region14: #{multi_head_attention.3} parent=11 // pred_check_branch
        %253 = sbr.rel (%p251) target = $region16
      $region15: #{multi_head_attention.3} parent=11 // pred_region
        _
      $region16: #{multi_head_attention.3} parent=11 // pred_fallthru
        _
      // Predicated region
      $region17: #{multi_head_attention.3} parent=11 // pred_check
        %p254 = pneg %p152
      $region18: #{multi_head_attention.3} parent=11 // pred_check_branch
        %256 = sbr.rel (%p254) target = $region20
      $region19: #{multi_head_attention.3} parent=11 // pred_region
        _
      $region20: #{multi_head_attention.3} parent=11 // pred_fallthru
        _
    $region12: #{multi_head_attention.3} parent=5 // pred_fallthru
      _
    %p257 = scmp.lt.s32.totalorder %s14, 2
    // Predicated region
    $region21: #{multi_head_attention.3} parent=5 // pred_check
      %p258 = pneg %p257
    $region22: #{multi_head_attention.3} parent=5 // pred_check_branch
      %260 = sbr.rel (%p258) target = $region24
    $region23: #{multi_head_attention.3} parent=5 // pred_region
      // Predicated region
      $region25: #{multi_head_attention.3} parent=23 // pred_check
        %p261 = pneg %p48
      $region26: #{multi_head_attention.3} parent=23 // pred_check_branch
        %263 = sbr.rel (%p261) target = $region28
      $region27: #{multi_head_attention.3} parent=23 // pred_region
        %p264 = scmp.lt.s32.totalorder %s21, 1
        %s265 = scalar_select %p264, %s21, 1
        %p266 = scmp.lt.s32.totalorder %s22, 0
        %s267 = scalar_select %p266, %s22, 0
        %s268 = sadd.s32 %s267, %s265
        %s269 = smul.addr %s268, 8
        %s270 = scalar_lea.vmem %s0, %s269
      $region28: #{multi_head_attention.3} parent=23 // pred_fallthru
        _
      // Predicated region
      $region29: #{multi_head_attention.3} parent=23 // pred_check
        %p271 = pneg %p76
      $region30: #{multi_head_attention.3} parent=23 // pred_check_branch
        %273 = sbr.rel (%p271) target = $region32
      $region31: #{multi_head_attention.3} parent=23 // pred_region
        %p274 = scmp.lt.s32.totalorder %s21, 1
        %s275 = scalar_select %p274, %s21, 1
        %p276 = scmp.lt.s32.totalorder %s22, 0
        %s277 = scalar_select %p276, %s22, 0
        %s278 = sadd.s32 %s277, %s275
        %s279 = smul.addr %s278, 8
        %s280 = scalar_lea.vmem %s1, %s279
      $region32: #{multi_head_attention.3} parent=23 // pred_fallthru
        _
      // Predicated region
      $region33: #{multi_head_attention.3} parent=23 // pred_check
        %p281 = pneg %p104
      $region34: #{multi_head_attention.3} parent=23 // pred_check_branch
        %283 = sbr.rel (%p281) target = $region36
      $region35: #{multi_head_attention.3} parent=23 // pred_region
        %p284 = scmp.lt.s32.totalorder %s21, 1
        %s285 = scalar_select %p284, %s21, 1
        %p286 = scmp.lt.s32.totalorder %s22, 0
        %s287 = scalar_select %p286, %s22, 0
        %s288 = sadd.s32 %s287, %s285
        %s289 = smul.addr %s288, 8
        %s290 = scalar_lea.vmem %s2, %s289
      $region36: #{multi_head_attention.3} parent=23 // pred_fallthru
        _
    $region24: #{multi_head_attention.3} parent=5 // pred_fallthru
      _
    %p291 = scmp.le.s32.totalorder 1, %s14
    %p292 = scmp.lt.s32.totalorder %s14, 3
    %p293 = pnand %p291, %p292
    %p294 = pneg %p293
    // Predicated region
    $region37: #{multi_head_attention.3} parent=5 // pred_check
      _
    $region38: #{multi_head_attention.3} parent=5 // pred_check_branch
      %296 = sbr.rel (%p293) target = $region40
    $region39: #{multi_head_attention.3} parent=5 // pred_region
      %s297 = ssub.s32 %s14, 1
      %p298 = scmp.lt.s32.totalorder %s23, 1
      %s299 = scalar_select %p298, %s23, 1
      %p300 = scmp.lt.s32.totalorder %s24, 0
      %s301 = scalar_select %p300, %s24, 0
      %s302 = sadd.s32 %s301, %s299
      %s303 = smul.addr %s302, 8
      %s304 = scalar_lea.vmem %s0, %s303
      %p305 = pneg %p54
      %p306 = pneg %p51
      %p307 = scmp.lt.s32.totalorder %s23, 1
      %s308 = scalar_select %p307, %s23, 1
      %p309 = scmp.lt.s32.totalorder %s24, 0
      %s310 = scalar_select %p309, %s24, 0
      %s311 = sadd.s32 %s310, %s308
      %s312 = smul.addr %s311, 8
      %s313 = scalar_lea.vmem %s1, %s312
      %p314 = pneg %p82
      %p315 = pneg %p79
      %p316 = scmp.lt.s32.totalorder %s23, 1
      %s317 = scalar_select %p316, %s23, 1
      %p318 = scmp.lt.s32.totalorder %s24, 0
      %s319 = scalar_select %p318, %s24, 0
      %s320 = sadd.s32 %s319, %s317
      %s321 = smul.addr %s320, 8
      %s322 = scalar_lea.vmem %s2, %s321
      %p323 = pneg %p110
      %p324 = pneg %p107
      %p325 = pneg %p131
      %p326 = pneg %p128
      %p327 = pneg %p152
      %p328 = pneg %p149
      %p329 = pneg %p180
      %p330 = pneg %p177
      %p331 = scmp.lt.s32.totalorder %s23, 1
      %s332 = scalar_select %p331, %s23, 1
      %p333 = scmp.lt.s32.totalorder %s24, 0
      %s334 = scalar_select %p333, %s24, 0
      %s335 = sadd.s32 %s334, %s332
      %s336 = smul.addr %s335, 4
      %s337 = scalar_lea.vmem %s5, %s336
      %p338 = pneg %p208
      %p339 = pneg %p205
      %p340 = scmp.lt.s32.totalorder %s23, 1
      %s341 = scalar_select %p340, %s23, 1
      %p342 = scmp.lt.s32.totalorder %s24, 0
      %s343 = scalar_select %p342, %s24, 0
      %s344 = sadd.s32 %s343, %s341
      %s345 = smul.addr %s344, 4
      %s346 = scalar_lea.vmem %s6, %s345
      %p347 = pneg %p236
      %p348 = pneg %p233
      %p349 = scmp.lt.s32.totalorder %s23, 1
      %s350 = scalar_select %p349, %s23, 1
      %p351 = scmp.lt.s32.totalorder %s24, 0
      %s352 = scalar_select %p351, %s24, 0
      %s353 = sadd.s32 %s352, %s350
      %s354 = smul.addr %s353, 4
      %s355 = scalar_lea.vmem %s7, %s354
      %p356 = scmp.lt.s32.totalorder %s23, 1
      %s357 = scalar_select %p356, %s23, 1
      %p358 = scmp.lt.s32.totalorder %s24, 0
      %s359 = scalar_select %p358, %s24, 0
      %s360 = sadd.s32 %s359, %s357
      %s361 = smul.addr %s360, 8
      %s362 = scalar_lea.vmem %s0, %s361
      %p363 = scmp.lt.s32.totalorder %s23, 1
      %s364 = scalar_select %p363, %s23, 1
      %p365 = scmp.lt.s32.totalorder %s24, 0
      %s366 = scalar_select %p365, %s24, 0
      %s367 = sadd.s32 %s366, %s364
      %s368 = smul.addr %s367, 8
      %s369 = scalar_lea.vmem %s1, %s368
      %p370 = scmp.lt.s32.totalorder %s23, 1
      %s371 = scalar_select %p370, %s23, 1
      %p372 = scmp.lt.s32.totalorder %s24, 0
      %s373 = scalar_select %p372, %s24, 0
      %s374 = sadd.s32 %s373, %s371
      %s375 = smul.addr %s374, 8
      %s376 = scalar_lea.vmem %s2, %s375
      %p377 = scmp.lt.s32.totalorder %s23, 1
      %s378 = scalar_select %p377, %s23, 1
      %p379 = scmp.lt.s32.totalorder %s24, 0
      %s380 = scalar_select %p379, %s24, 0
      %s381 = sadd.s32 %s380, %s378
      %s382 = smul.addr %s381, 4
      %s383 = scalar_lea.vmem %s5, %s382
      %p384 = scmp.lt.s32.totalorder %s23, 1
      %s385 = scalar_select %p384, %s23, 1
      %p386 = scmp.lt.s32.totalorder %s24, 0
      %s387 = scalar_select %p386, %s24, 0
      %s388 = sadd.s32 %s387, %s385
      %s389 = smul.addr %s388, 4
      %s390 = scalar_lea.vmem %s6, %s389
      %p391 = scmp.lt.s32.totalorder %s23, 1
      %s392 = scalar_select %p391, %s23, 1
      %p393 = scmp.lt.s32.totalorder %s24, 0
      %s394 = scalar_select %p393, %s24, 0
      %s395 = sadd.s32 %s394, %s392
      %s396 = smul.addr %s395, 4
      %s397 = scalar_lea.vmem %s7, %s396
      %v399 = vld [vmem:[%s362] sm:$0xff]
      %v400 = vpack.c.bf16 %v399, %v399
      %v401 = vld [vmem:[%s3] sm:$0xf]
      %v402 = vld [vmem:[%s3 + $0x4] sm:$0xf]
      %v403 = vld [vmem:[%s3 + $0x8] sm:$0xf]
      %v404 = vld [vmem:[%s3 + $0xc] sm:$0xf]
      %v405 = vld [vmem:[%s4] sm:$0x1]
      %v407 = vlaneseq
      %v408 = vshrl.u32 %v407, 7
      %v409 = vsub.s32 0, %v408
      %v410 = vrot.slane %v405, %v409
      %v416 = vunpack.c.l.b16 %v401
      %v417 = vunpack.c.l.b16 %v402
      %v418 = vunpack.c.l.b16 %v403
      %v419 = vunpack.c.l.b16 %v404
      %v420 = vpack.c.b16 %v417, %v416
      %v421 = vpack.c.b16 %v419, %v418
      %vm424 = vcmask 261120
      %v426 = vsel %vm424, %v400, 0
      %428 = vmatprep.subr.bf16.mxu0 0
      %429 = vmatpush1.bf16.msra.mxu0 %v420
      %430 = vmatprep.subr.bf16.mxu0 0
      %431 = vmatpush1.bf16.msra.mxu0 %v421
      %432 = vmatprep.subr.bf16.mxu0 0
      %433 = vmatpush1.bf16.msra.mxu0 0
      %434 = vmatprep.subr.bf16.mxu0 0
      %435 = vmatpush1.bf16.msra.mxu0 0
      %436 = vmatprep.subr.bf16.mxu0 0
      %437 = vmatpush1.bf16.msra.mxu0 0
      %438 = vmatprep.subr.bf16.mxu0 0
      %439 = vmatpush1.bf16.msra.mxu0 0
      %440 = vmatprep.subr.bf16.mxu0 0
      %441 = vmatpush1.bf16.msra.mxu0 0
      %442 = vmatprep.subr.bf16.mxu0 0
      %443 = vmatpush1.bf16.msra.mxu0 0
      %444 = vmatprep.subr.bf16.mxu0 0
      %445 = vmatpush1.bf16.msra.mxu0 0
      %446 = vmatprep.subr.bf16.mxu0 0
      %447 = vmatpush1.bf16.msra.mxu0 0
      %448 = vmatprep.subr.bf16.mxu0 0
      %449 = vmatpush1.bf16.msra.mxu0 0
      %450 = vmatprep.subr.bf16.mxu0 0
      %451 = vmatpush1.bf16.msra.mxu0 0
      %452 = vmatprep.subr.bf16.mxu0 0
      %453 = vmatpush1.bf16.msra.mxu0 0
      %454 = vmatprep.subr.bf16.mxu0 0
      %455 = vmatpush1.bf16.msra.mxu0 0
      %456 = vmatprep.subr.bf16.mxu0 0
      %457 = vmatpush1.bf16.msra.mxu0 0
      %458 = vmatprep.subr.bf16.mxu0 0
      %459 = vmatpush1.bf16.msra.mxu0 0
      %460 = vmatprep.mubr.bf16.mxu0 0
      %461 = vmatmul.mubr.bf16.gmra.mrb[0].mxu0 %v426
      %v462 = vpop.f32.mrb[0].mxu0
      %v463 = vadd.f32 %v410, %v462
      %v464 = vpop.f32.mrb[0].mxu0
      %v465 = vpop.f32.mrb[0].mxu0
      %v466 = vpop.f32.mrb[0].mxu0
      %467 = vdwg.mxu0
      %v468 = vld [vmem:[%s369] sm:$0xff]
      %v469 = vpack.c.bf16 %v468, %v468
      %s470 = scalar_lea.vmem %s3, 16
      %v471 = vld [vmem:[%s470] sm:$0xf]
      %v472 = vld [vmem:[%s470 + $0x4] sm:$0xf]
      %v473 = vld [vmem:[%s470 + $0x8] sm:$0xf]
      %v474 = vld [vmem:[%s470 + $0xc] sm:$0xf]
      %s475 = scalar_lea.vmem %s4, 1
      %v476 = vld [vmem:[%s475] sm:$0x1]
      %v478 = vlaneseq
      %v479 = vshrl.u32 %v478, 7
      %v480 = vsub.s32 0, %v479
      %v481 = vrot.slane %v476, %v480
      %v487 = vunpack.c.l.b16 %v471
      %v488 = vunpack.c.l.b16 %v472
      %v489 = vunpack.c.l.b16 %v473
      %v490 = vunpack.c.l.b16 %v474
      %v491 = vpack.c.b16 %v488, %v487
      %v492 = vpack.c.b16 %v490, %v489
      %v496 = vsel %vm424, %v469, 0
      %498 = vmatprep.subr.bf16.mxu0 0
      %499 = vmatpush1.bf16.msra.mxu0 %v491
      %500 = vmatprep.subr.bf16.mxu0 0
      %501 = vmatpush1.bf16.msra.mxu0 %v492
      %502 = vmatprep.subr.bf16.mxu0 0
      %503 = vmatpush1.bf16.msra.mxu0 0
      %504 = vmatprep.subr.bf16.mxu0 0
      %505 = vmatpush1.bf16.msra.mxu0 0
      %506 = vmatprep.subr.bf16.mxu0 0
      %507 = vmatpush1.bf16.msra.mxu0 0
      %508 = vmatprep.subr.bf16.mxu0 0
      %509 = vmatpush1.bf16.msra.mxu0 0
      %510 = vmatprep.subr.bf16.mxu0 0
      %511 = vmatpush1.bf16.msra.mxu0 0
      %512 = vmatprep.subr.bf16.mxu0 0
      %513 = vmatpush1.bf16.msra.mxu0 0
      %514 = vmatprep.subr.bf16.mxu0 0
      %515 = vmatpush1.bf16.msra.mxu0 0
      %516 = vmatprep.subr.bf16.mxu0 0
      %517 = vmatpush1.bf16.msra.mxu0 0
      %518 = vmatprep.subr.bf16.mxu0 0
      %519 = vmatpush1.bf16.msra.mxu0 0
      %520 = vmatprep.subr.bf16.mxu0 0
      %521 = vmatpush1.bf16.msra.mxu0 0
      %522 = vmatprep.subr.bf16.mxu0 0
      %523 = vmatpush1.bf16.msra.mxu0 0
      %524 = vmatprep.subr.bf16.mxu0 0
      %525 = vmatpush1.bf16.msra.mxu0 0
      %526 = vmatprep.subr.bf16.mxu0 0
      %527 = vmatpush1.bf16.msra.mxu0 0
      %528 = vmatprep.subr.bf16.mxu0 0
      %529 = vmatpush1.bf16.msra.mxu0 0
      %530 = vmatprep.mubr.bf16.mxu0 0
      %531 = vmatmul.mubr.bf16.gmra.mrb[0].mxu0 %v496
      %v532 = vpop.f32.mrb[0].mxu0
      %v533 = vadd.f32 %v481, %v532
      %v534 = vpop.f32.mrb[0].mxu0
      %v535 = vpop.f32.mrb[0].mxu0
      %v536 = vpop.f32.mrb[0].mxu0
      %537 = vdwg.mxu0
      %v538 = vld [vmem:[%s376] sm:$0xff]
      %v539 = vpack.c.bf16 %v538, %v538
      %s540 = scalar_lea.vmem %s3, 32
      %v541 = vld [vmem:[%s540] sm:$0xf]
      %v542 = vld [vmem:[%s540 + $0x4] sm:$0xf]
      %v543 = vld [vmem:[%s540 + $0x8] sm:$0xf]
      %v544 = vld [vmem:[%s540 + $0xc] sm:$0xf]
      %s545 = scalar_lea.vmem %s4, 2
      %v546 = vld [vmem:[%s545] sm:$0x1]
      %v548 = vlaneseq
      %v549 = vshrl.u32 %v548, 7
      %v550 = vsub.s32 0, %v549
      %v551 = vrot.slane %v546, %v550
      %v557 = vunpack.c.l.b16 %v541
      %v558 = vunpack.c.l.b16 %v542
      %v559 = vunpack.c.l.b16 %v543
      %v560 = vunpack.c.l.b16 %v544
      %v561 = vpack.c.b16 %v558, %v557
      %v562 = vpack.c.b16 %v560, %v559
      %v566 = vsel %vm424, %v539, 0
      %568 = vmatprep.subr.bf16.mxu0 0
      %569 = vmatpush1.bf16.msra.mxu0 %v561
      %570 = vmatprep.subr.bf16.mxu0 0
      %571 = vmatpush1.bf16.msra.mxu0 %v562
      %572 = vmatprep.subr.bf16.mxu0 0
      %573 = vmatpush1.bf16.msra.mxu0 0
      %574 = vmatprep.subr.bf16.mxu0 0
      %575 = vmatpush1.bf16.msra.mxu0 0
      %576 = vmatprep.subr.bf16.mxu0 0
      %577 = vmatpush1.bf16.msra.mxu0 0
      %578 = vmatprep.subr.bf16.mxu0 0
      %579 = vmatpush1.bf16.msra.mxu0 0
      %580 = vmatprep.subr.bf16.mxu0 0
      %581 = vmatpush1.bf16.msra.mxu0 0
      %582 = vmatprep.subr.bf16.mxu0 0
      %583 = vmatpush1.bf16.msra.mxu0 0
      %584 = vmatprep.subr.bf16.mxu0 0
      %585 = vmatpush1.bf16.msra.mxu0 0
      %586 = vmatprep.subr.bf16.mxu0 0
      %587 = vmatpush1.bf16.msra.mxu0 0
      %588 = vmatprep.subr.bf16.mxu0 0
      %589 = vmatpush1.bf16.msra.mxu0 0
      %590 = vmatprep.subr.bf16.mxu0 0
      %591 = vmatpush1.bf16.msra.mxu0 0
      %592 = vmatprep.subr.bf16.mxu0 0
      %593 = vmatpush1.bf16.msra.mxu0 0
      %594 = vmatprep.subr.bf16.mxu0 0
      %595 = vmatpush1.bf16.msra.mxu0 0
      %596 = vmatprep.subr.bf16.mxu0 0
      %597 = vmatpush1.bf16.msra.mxu0 0
      %598 = vmatprep.subr.bf16.mxu0 0
      %599 = vmatpush1.bf16.msra.mxu0 0
      %600 = vmatprep.mubr.bf16.mxu0 0
      %601 = vmatmul.mubr.bf16.gmra.mrb[0].mxu0 %v566
      %v602 = vpop.f32.mrb[0].mxu0
      %v603 = vadd.f32 %v551, %v602
      %v604 = vpop.f32.mrb[0].mxu0
      %v605 = vpop.f32.mrb[0].mxu0
      %v606 = vpop.f32.mrb[0].mxu0
      %607 = vdwg.mxu0
      %v608 = vmul.f32 %v463, 0.35355338
      %v609 = vpack.c.bf16 %v608, %v608
      %vm610 = vcmask 257024
      %611 = vst.msk [vmem:[%s383] sm:$0xf] %vm610, %v609
      %v612 = vpack.c.bf16 %v533, %v533
      %613 = vst.msk [vmem:[%s390] sm:$0xf] %vm610, %v612
      %v614 = vpack.c.bf16 %v603, %v603
      %615 = vst.msk [vmem:[%s397] sm:$0xf] %vm610, %v614
      %p616 = scmp.lt.s32.totalorder %s23, 1
      %s617 = scalar_select %p616, %s23, 1
      %p618 = scmp.lt.s32.totalorder %s24, 0
      %s619 = scalar_select %p618, %s24, 0
      %s620 = sadd.s32 %s619, %s617
      %s621 = smul.addr %s620, 4
      %s622 = scalar_lea.vmem %s5, %s621
      %p623 = scmp.lt.s32.totalorder %s23, 1
      %s624 = scalar_select %p623, %s23, 1
      %p625 = scmp.lt.s32.totalorder %s24, 0
      %s626 = scalar_select %p625, %s24, 0
      %s627 = sadd.s32 %s626, %s624
      %s628 = smul.addr %s627, 4
      %s629 = scalar_lea.vmem %s6, %s628
      %p630 = scmp.lt.s32.totalorder %s23, 1
      %s631 = scalar_select %p630, %s23, 1
      %p632 = scmp.lt.s32.totalorder %s24, 0
      %s633 = scalar_select %p632, %s24, 0
      %s634 = sadd.s32 %s633, %s631
      %s635 = smul.addr %s634, 4
      %s636 = scalar_lea.vmem %s7, %s635
      // Predicated region
      $region41: #{multi_head_attention.3} parent=39 // pred_check
        %p637 = pneg %p177
      $region42: #{multi_head_attention.3} parent=39 // pred_check_branch
        %639 = sbr.rel (%p637) target = $region44
      $region43: #{multi_head_attention.3} parent=39 // pred_region
        _
      $region44: #{multi_head_attention.3} parent=39 // pred_fallthru
        _
      // Predicated region
      $region45: #{multi_head_attention.3} parent=39 // pred_check
        %p640 = pneg %p205
      $region46: #{multi_head_attention.3} parent=39 // pred_check_branch
        %642 = sbr.rel (%p640) target = $region48
      $region47: #{multi_head_attention.3} parent=39 // pred_region
        _
      $region48: #{multi_head_attention.3} parent=39 // pred_fallthru
        _
      // Predicated region
      $region49: #{multi_head_attention.3} parent=39 // pred_check
        %p643 = pneg %p233
      $region50: #{multi_head_attention.3} parent=39 // pred_check_branch
        %645 = sbr.rel (%p643) target = $region52
      $region51: #{multi_head_attention.3} parent=39 // pred_region
        _
      $region52: #{multi_head_attention.3} parent=39 // pred_fallthru
        _
    $region40: #{multi_head_attention.3} parent=5 // pred_fallthru
      _
    %p646 = scmp.le.s32.totalorder 2, %s14
    // Predicated region
    $region53: #{multi_head_attention.3} parent=5 // pred_check
      %p647 = pneg %p646
    $region54: #{multi_head_attention.3} parent=5 // pred_check_branch
      %649 = sbr.rel (%p647) target = $region56
    $region55: #{multi_head_attention.3} parent=5 // pred_region
      %s650 = ssub.s32 %s14, 2
      // Predicated region
      $region57: #{multi_head_attention.3} parent=55 // pred_check
        %p651 = pneg %p183
      $region58: #{multi_head_attention.3} parent=55 // pred_check_branch
        %653 = sbr.rel (%p651) target = $region60
      $region59: #{multi_head_attention.3} parent=55 // pred_region
        %p654 = scmp.lt.s32.totalorder %s25, 1
        %s655 = scalar_select %p654, %s25, 1
        %p656 = scmp.lt.s32.totalorder %s26, 0
        %s657 = scalar_select %p656, %s26, 0
        %s658 = sadd.s32 %s657, %s655
        %s659 = smul.addr %s658, 4
        %s660 = scalar_lea.vmem %s5, %s659
      $region60: #{multi_head_attention.3} parent=55 // pred_fallthru
        _
      // Predicated region
      $region61: #{multi_head_attention.3} parent=55 // pred_check
        %p661 = pneg %p211
      $region62: #{multi_head_attention.3} parent=55 // pred_check_branch
        %663 = sbr.rel (%p661) target = $region64
      $region63: #{multi_head_attention.3} parent=55 // pred_region
        %p664 = scmp.lt.s32.totalorder %s25, 1
        %s665 = scalar_select %p664, %s25, 1
        %p666 = scmp.lt.s32.totalorder %s26, 0
        %s667 = scalar_select %p666, %s26, 0
        %s668 = sadd.s32 %s667, %s665
        %s669 = smul.addr %s668, 4
        %s670 = scalar_lea.vmem %s6, %s669
      $region64: #{multi_head_attention.3} parent=55 // pred_fallthru
        _
      // Predicated region
      $region65: #{multi_head_attention.3} parent=55 // pred_check
        %p671 = pneg %p239
      $region66: #{multi_head_attention.3} parent=55 // pred_check_branch
        %673 = sbr.rel (%p671) target = $region68
      $region67: #{multi_head_attention.3} parent=55 // pred_region
        %p674 = scmp.lt.s32.totalorder %s25, 1
        %s675 = scalar_select %p674, %s25, 1
        %p676 = scmp.lt.s32.totalorder %s26, 0
        %s677 = scalar_select %p676, %s26, 0
        %s678 = sadd.s32 %s677, %s675
        %s679 = smul.addr %s678, 4
        %s680 = scalar_lea.vmem %s7, %s679
      $region68: #{multi_head_attention.3} parent=55 // pred_fallthru
        _
    $region56: #{multi_head_attention.3} parent=5 // pred_fallthru
      _
  $region6: #{multi_head_attention.3} parent=0 // loop_footer
    %s18 = sadd.s32 1, %s14
  $region7: #{multi_head_attention.3} parent=0 // loop_footer_branch
    %13 = sbr.rel target = $region3
  $region8: #{multi_head_attention.3} parent=0 // loop_exit
    _

</llo_original>
